<compile_context>
chip_gen: v5e
topology: v5e:2x2
jax: 0.10.0
libtpu: 0.0.40
codegen_flags: <defaults>
</compile_context>

<pallas_src>
import functools

import jax
import jax.numpy as jnp
from jax.experimental import pallas as pl
from jax.experimental.pallas import tpu as pltpu

LANE = 128


def _gcn_group_kernel(num_layers,
                      node_feat_ref, edge_feat_ref, adj_ref, adj_hat_ref, mean_sel_ref,
                      w_node_ref, w_edge_ref, w_gcn_ref, w_pred_ref, w_cls_ref, bias_ref,
                      probs_ref, pred_ref, edge_out_ref):
    f32 = jnp.float32

    # Packed bias slab: full 128-lane rows (zero padded; classifier row padded with
    # -1e30), so every read below is an unmasked full-lane load.
    b_node = bias_ref[0:1, :]
    b_edge = bias_ref[1:2, :]
    b_gcn = bias_ref[2:3, :]
    b_pred = bias_ref[3:4, :]
    b_cls = bias_ref[4:5, :]

    # ---- DGLInit ---------------------------------------------------------------
    node_h = jnp.dot(node_feat_ref[...], w_node_ref[...],
                     preferred_element_type=f32) + b_node                       # (GN, 128)
    edge_out_ref[...] = (jnp.dot(edge_feat_ref[...], w_edge_ref[...],
                                 preferred_element_type=f32) + b_edge)          # (GE, 128)

    # ---- Node_feat_fusion: hidden[v] = sum_{u->v} hidden[u] (block-diagonal adj) ----
    hidden = jnp.dot(adj_ref[...], node_h, preferred_element_type=f32)          # (GN, 128)

    adj_hat = adj_hat_ref[...]     # block-diagonal (adj * 1/deg + I), wrapper-built
    mean_sel = mean_sel_ref[...]   # (G_pad, GN): 1/N in each graph's own node columns
    w_gcn = w_gcn_ref[...]

    # ---- GCNPredict accumulated per layer (stack slot 0 is node_h) ----------------
    feat = jnp.dot(jnp.dot(mean_sel, node_h, preferred_element_type=f32),
                   w_pred_ref[0:LANE, :], preferred_element_type=f32)           # (G_pad,128)

    for l in range(num_layers):
        # red = sum_{u->v} hidden[u]/deg[u] + hidden[v]  ==  adj_hat @ hidden
        red = jnp.dot(adj_hat, hidden, preferred_element_type=f32)
        h = jnp.dot(red, w_gcn, preferred_element_type=f32) + b_gcn
        hidden = jnp.where(h > 0, h, 0.01 * h)                                  # LeakyReLU
        feat = feat + jnp.dot(
            jnp.dot(mean_sel, hidden, preferred_element_type=f32),
            w_pred_ref[(l + 1) * LANE:(l + 2) * LANE, :],
            preferred_element_type=f32)

    feat = feat + b_pred
    pred_ref[...] = feat                                                        # GCNPredict

    # ---- PredictOnlyGCN: Linear + softmax; padded logits = -1e30 -> exp exactly 0 ----
    logits = jnp.dot(feat, w_cls_ref[...], preferred_element_type=f32) + b_cls
    m = jnp.max(logits, axis=-1, keepdims=True)
    e = jnp.exp(logits - m)
    probs_ref[...] = e / jnp.sum(e, axis=-1, keepdims=True)


def gcn_model_forward(node_feat, edge_feat, adj, inv_deg, params, num_layers,
                      target_rows=256):
    """Batched forward.
    node_feat [B,N,Fn], edge_feat [B,E,Fe], adj [B,N,N] (adj[b,v,u]=#edges u->v),
    inv_deg [B,N] = 1/out_degree. Returns (probs [B,C], predict [B,H], edge_hidden [B,E,H]).
    """
    B, N, NODE_F = node_feat.shape
    _, E, EDGE_F = edge_feat.shape
    H = params["w_gcn"].shape[0]
    C = params["w_cls"].shape[1]
    f32 = jnp.float32

    # ---- group graphs so each grid step feeds ~target_rows rows to the MXU ---------
    # (256 targets the v6e/v7x 2x256 MXU; at B=8,N=16 this gives one 128-row group.)
    G = 1
    for g in range(1, B + 1):
        if B % g == 0 and g * N <= target_rows:
            G = g
    ngroups = B // G
    GN, GE = G * N, G * E
    G_pad = -(-G // 8) * 8

    # ---- block-diagonal adjacency + degree-normalised/residual variant -------------
    eye_n = jnp.eye(N, dtype=f32)
    adj_hat = adj * inv_deg[:, None, :] + eye_n            # adj @ diag(1/deg) + I per graph
    eye_g = jnp.eye(G, dtype=f32)

    def block_diag(a):
        a = a.reshape(ngroups, G, N, N)
        return jnp.einsum('rgij,gh->rgihj', a, eye_g).reshape(ngroups, GN, GN)

    adj_bd = block_diag(adj)
    adj_hat_bd = block_diag(adj_hat)

    # ---- per-graph mean-over-nodes selector (same for every group) -----------------
    cols = jnp.arange(GN)
    mean_sel = jnp.zeros((G_pad, GN), f32).at[cols // N, cols].set(1.0 / N)

    # ---- lane-pad weights once so the whole hidden path is 128 lanes, zero beyond H --
    w_node_p = jnp.zeros((NODE_F, LANE), f32).at[:, :H].set(params["w_node"])
    w_edge_p = jnp.zeros((EDGE_F, LANE), f32).at[:, :H].set(params["w_edge"])
    w_gcn_p = jnp.zeros((LANE, LANE), f32).at[:H, :H].set(params["w_gcn"])
    w_cls_p = jnp.zeros((LANE, LANE), f32).at[:H, :C].set(params["w_cls"])
    w_pred_p = jnp.zeros((LANE * (num_layers + 1), LANE), f32)
    for l in range(num_layers + 1):
        w_pred_p = w_pred_p.at[l * LANE:l * LANE + H, :H].set(
            params["w_pred"][l * H:(l + 1) * H, :])

    # ---- pack the five biases into one (8, 128) slab --------------------------------
    bias_slab = jnp.zeros((8, LANE), f32)
    bias_slab = bias_slab.at[0, :H].set(params["b_node"].reshape(-1))
    bias_slab = bias_slab.at[1, :H].set(params["b_edge"].reshape(-1))
    bias_slab = bias_slab.at[2, :H].set(params["b_gcn"].reshape(-1))
    bias_slab = bias_slab.at[3, :H].set(params["b_pred"].reshape(-1))
    cls_row = jnp.full((LANE,), -1e30, f32).at[:C].set(params["b_cls"].reshape(-1))
    bias_slab = bias_slab.at[4, :].set(cls_row)

    node_flat = node_feat.reshape(ngroups, GN, NODE_F)
    edge_flat = edge_feat.reshape(ngroups, GE, EDGE_F)

    probs_t, pred_t, edge_t = pl.pallas_call(
        functools.partial(_gcn_group_kernel, num_layers),
        out_shape=(jax.ShapeDtypeStruct((ngroups, G_pad, LANE), f32),   # softmax probs
                   jax.ShapeDtypeStruct((ngroups, G_pad, LANE), f32),   # GCNPredict out
                   jax.ShapeDtypeStruct((ngroups, GE, LANE), f32)),     # edata['hidden']
        grid_spec=pltpu.PrefetchScalarGridSpec(
            num_scalar_prefetch=0,
            grid=(ngroups,),                       # one graph-group per grid step
            in_specs=[
                pl.BlockSpec((None, GN, NODE_F), lambda r: (r, 0, 0)),   # node feats
                pl.BlockSpec((None, GE, EDGE_F), lambda r: (r, 0, 0)),   # edge feats
                pl.BlockSpec((None, GN, GN), lambda r: (r, 0, 0)),       # adj (block-diag)
                pl.BlockSpec((None, GN, GN), lambda r: (r, 0, 0)),       # adj_hat
                pl.BlockSpec((G_pad, GN), lambda r: (0, 0)),             # mean selector
                pl.BlockSpec((NODE_F, LANE), lambda r: (0, 0)),          # w_node (padded)
                pl.BlockSpec((EDGE_F, LANE), lambda r: (0, 0)),          # w_edge (padded)
                pl.BlockSpec((LANE, LANE), lambda r: (0, 0)),            # w_gcn  (padded)
                pl.BlockSpec((LANE * (num_layers + 1), LANE), lambda r: (0, 0)),  # w_pred
                pl.BlockSpec((LANE, LANE), lambda r: (0, 0)),            # w_cls  (padded)
                pl.BlockSpec((8, LANE), lambda r: (0, 0)),               # packed biases
            ],
            out_specs=(
                pl.BlockSpec((None, G_pad, LANE), lambda r: (r, 0, 0)),
                pl.BlockSpec((None, G_pad, LANE), lambda r: (r, 0, 0)),
                pl.BlockSpec((None, GE, LANE), lambda r: (r, 0, 0)),
            ),
        ),
        compiler_params=pltpu.CompilerParams(dimension_semantics=("parallel",)),
    )(node_flat, edge_flat, adj_bd, adj_hat_bd, mean_sel,
      w_node_p, w_edge_p, w_gcn_p, w_pred_p, w_cls_p, bias_slab)

    probs = probs_t[:, :G, :C].reshape(B, C)          # PredictOnlyGCN output
    predict = pred_t[:, :G, :H].reshape(B, H)         # GCNPredict output (dgl_predict)
    edge_hidden = edge_t.reshape(B, E, LANE)[:, :, :H]  # edata['hidden']
    return probs, predict, edge_hidden


def _reference_single(node_feat, edge_feat, adj, inv_deg_col, params, num_layers):
    node_h = node_feat @ params["w_node"] + params["b_node"]
    edge_h = edge_feat @ params["w_edge"] + params["b_edge"]
    stack = [node_h]
    hidden = adj @ node_h
    for _ in range(num_layers):
        agg = adj @ (hidden * inv_deg_col)
        red = agg + hidden
        h = red @ params["w_gcn"] + params["b_gcn"]
        hidden = jnp.where(h > 0, h, 0.01 * h)
        stack.append(hidden)
    stack = jnp.concatenate(stack, axis=1)
    mean = jnp.mean(stack, axis=0, keepdims=True)
    predict = mean @ params["w_pred"] + params["b_pred"]        # GCNPredict
    logits = predict @ params["w_cls"] + params["b_cls"]
    return jax.nn.softmax(logits, axis=-1)[0], predict[0], edge_h


def reference_forward(node_feat, edge_feat, adj, inv_deg, params, num_layers):
    fn = lambda nf, ef, a, idc: _reference_single(nf, ef, a, idc, params, num_layers)
    return jax.vmap(fn)(node_feat, edge_feat, adj, inv_deg[..., None])


if __name__ == "__main__":
    key = jax.random.PRNGKey(0)
    B = 8                                   # graphs in the batch (one graph-group)
    N, E = 16, 48                           # nodes, edges per graph
    NODE_F, EDGE_F, GRAPH_F = 12, 8, 10     # nodefeatsize, edgefeatsize, graphfeatsize
    H, LAYERS, CLASSES = 32, 2, 4           # hidden_size, gcn_layers, classnum

    keys = jax.random.split(key, 16)
    node_feat = jax.random.normal(keys[0], (B, N, NODE_F), jnp.float32)
    edge_feat = jax.random.normal(keys[1], (B, E, EDGE_F), jnp.float32)
    src = jax.random.randint(keys[2], (B, E), 0, N)
    dst = jax.random.randint(keys[3], (B, E), 0, N)
    bidx = jnp.arange(B)[:, None]
    adj = jnp.zeros((B, N, N), jnp.float32).at[bidx, dst, src].add(1.0)   # adj[b, dst, src]

    # ndata['degree'] = float out-degree (used as edge.src['degree'] in msg_gcn);
    # clamp to >=1 (zero-out-degree nodes never send messages).
    out_deg = jnp.sum(adj, axis=1)                       # (B, N)
    inv_deg = 1.0 / jnp.maximum(out_deg, 1.0)

    def linear_init(kw, kb, fan_in, fan_out):
        bound = 1.0 / float(fan_in) ** 0.5
        w = jax.random.uniform(kw, (fan_in, fan_out), jnp.float32, -bound, bound)
        b = jax.random.uniform(kb, (1, fan_out), jnp.float32, -bound, bound)
        return w, b

    w_node, b_node = linear_init(keys[4], keys[5], NODE_F, H)
    w_edge, b_edge = linear_init(keys[6], keys[7], EDGE_F, H)
    w_gcn, b_gcn = linear_init(keys[8], keys[9], H, H)
    w_pred, b_pred = linear_init(keys[10], keys[11], H * (LAYERS + 1), H)
    w_cls, b_cls = linear_init(keys[12], keys[13], H, CLASSES)

    # GCNModel.graph_feat_init (Linear(GRAPH_F, H)) exists in the module but forward()
    # never applies it, so base_data is intentionally not an input to the kernel.
    params = dict(w_node=w_node, b_node=b_node, w_edge=w_edge, b_edge=b_edge,
                  w_gcn=w_gcn, b_gcn=b_gcn, w_pred=w_pred, b_pred=b_pred,
                  w_cls=w_cls, b_cls=b_cls)

    run = jax.jit(functools.partial(gcn_model_forward, num_layers=LAYERS))
    probs, predict, edge_hidden = run(node_feat, edge_feat, adj, inv_deg, params)
    jax.block_until_ready((probs, predict, edge_hidden))

    ref_probs, ref_predict, ref_edge = reference_forward(node_feat, edge_feat, adj,
                                                         inv_deg, params, LAYERS)
    assert probs.shape == (B, CLASSES)
    assert predict.shape == (B, H)
    assert edge_hidden.shape == (B, E, H)
    assert jnp.allclose(probs, ref_probs, atol=2e-4, rtol=2e-4)
    assert jnp.allclose(predict, ref_predict, atol=2e-4, rtol=2e-4)
    assert jnp.allclose(edge_hidden, ref_edge, atol=2e-4, rtol=2e-4)
    assert jnp.allclose(jnp.sum(probs, axis=-1), 1.0, atol=1e-5)
    print("KERNEL_OK")
</pallas_src>

<mosaic_0001>
module attributes {stable_mosaic.version = 11 : i64} {
  func.func @_gcn_group_kernel(%arg0: i32, %arg1: memref<1x128x12xf32, #tpu.memory_space<vmem>>, %arg2: memref<1x384x8xf32, #tpu.memory_space<vmem>>, %arg3: memref<1x128x128xf32, #tpu.memory_space<vmem>>, %arg4: memref<1x128x128xf32, #tpu.memory_space<vmem>>, %arg5: memref<8x128xf32, #tpu.memory_space<vmem>>, %arg6: memref<12x128xf32, #tpu.memory_space<vmem>>, %arg7: memref<8x128xf32, #tpu.memory_space<vmem>>, %arg8: memref<128x128xf32, #tpu.memory_space<vmem>>, %arg9: memref<384x128xf32, #tpu.memory_space<vmem>>, %arg10: memref<128x128xf32, #tpu.memory_space<vmem>>, %arg11: memref<8x128xf32, #tpu.memory_space<vmem>>, %arg12: memref<1x8x128xf32, #tpu.memory_space<vmem>>, %arg13: memref<1x8x128xf32, #tpu.memory_space<vmem>>, %arg14: memref<1x384x128xf32, #tpu.memory_space<vmem>>) attributes {dimension_semantics = [#tpu.dimension_semantics<parallel>], iteration_bounds = array<i64: 1>, scalar_prefetch = 0 : i64, scratch_operands = 0 : i64, tpu.core_type = #tpu.core_type<tc>, window_params = [{transform_indices = @transform_0, window_bounds = array<i64: 1, 128, 12>}, {transform_indices = @transform_1, window_bounds = array<i64: 1, 384, 8>}, {transform_indices = @transform_2, window_bounds = array<i64: 1, 128, 128>}, {transform_indices = @transform_3, window_bounds = array<i64: 1, 128, 128>}, {pipeline_mode = #tpu.pipeline_mode<synchronous>, transform_indices = @transform_4, window_bounds = array<i64: 8, 128>}, {pipeline_mode = #tpu.pipeline_mode<synchronous>, transform_indices = @transform_5, window_bounds = array<i64: 12, 128>}, {pipeline_mode = #tpu.pipeline_mode<synchronous>, transform_indices = @transform_6, window_bounds = array<i64: 8, 128>}, {pipeline_mode = #tpu.pipeline_mode<synchronous>, transform_indices = @transform_7, window_bounds = array<i64: 128, 128>}, {pipeline_mode = #tpu.pipeline_mode<synchronous>, transform_indices = @transform_8, window_bounds = array<i64: 384, 128>}, {pipeline_mode = #tpu.pipeline_mode<synchronous>, transform_indices = @transform_9, window_bounds = array<i64: 128, 128>}, {pipeline_mode = #tpu.pipeline_mode<synchronous>, transform_indices = @transform_10, window_bounds = array<i64: 8, 128>}, {transform_indices = @transform_11, window_bounds = array<i64: 1, 8, 128>}, {transform_indices = @transform_12, window_bounds = array<i64: 1, 8, 128>}, {transform_indices = @transform_13, window_bounds = array<i64: 1, 384, 128>}]} {
    %c0 = arith.constant 0 : index
    %c0_0 = arith.constant 0 : index
    %0 = vector.load %arg11[%c0, %c0_0] : memref<8x128xf32, #tpu.memory_space<vmem>>, vector<1x128xf32>
    %c1 = arith.constant 1 : index
    %c0_1 = arith.constant 0 : index
    %1 = vector.load %arg11[%c1, %c0_1] : memref<8x128xf32, #tpu.memory_space<vmem>>, vector<1x128xf32>
    %c2 = arith.constant 2 : index
    %c0_2 = arith.constant 0 : index
    %2 = vector.load %arg11[%c2, %c0_2] : memref<8x128xf32, #tpu.memory_space<vmem>>, vector<1x128xf32>
    %c3 = arith.constant 3 : index
    %c0_3 = arith.constant 0 : index
    %3 = vector.load %arg11[%c3, %c0_3] : memref<8x128xf32, #tpu.memory_space<vmem>>, vector<1x128xf32>
    %c4 = arith.constant 4 : index
    %c0_4 = arith.constant 0 : index
    %4 = vector.load %arg11[%c4, %c0_4] : memref<8x128xf32, #tpu.memory_space<vmem>>, vector<1x128xf32>
    %c0_5 = arith.constant 0 : index
    %c0_6 = arith.constant 0 : index
    %c0_7 = arith.constant 0 : index
    %5 = vector.load %arg1[%c0_5, %c0_6, %c0_7] : memref<1x128x12xf32, #tpu.memory_space<vmem>>, vector<1x128x12xf32>
    %6 = vector.shape_cast %5 : vector<1x128x12xf32> to vector<128x12xf32>
    %c0_8 = arith.constant 0 : index
    %c0_9 = arith.constant 0 : index
    %7 = vector.load %arg6[%c0_8, %c0_9] : memref<12x128xf32, #tpu.memory_space<vmem>>, vector<12x128xf32>
    %cst = arith.constant dense<0.000000e+00> : vector<128x128xf32>
    %8 = tpu.matmul %6, %7, %cst {dimension_numbers = #tpu.dot_dimension_numbers<[1], [0], [0], [1], [0, 0, 1, 1], [], []>} : vector<128x12xf32>, vector<12x128xf32>, vector<128x128xf32> -> vector<128x128xf32>
    %9 = vector.broadcast %0 : vector<1x128xf32> to vector<128x128xf32>
    %10 = arith.addf %8, %9 : vector<128x128xf32>
    %c0_10 = arith.constant 0 : index
    %c0_11 = arith.constant 0 : index
    %c0_12 = arith.constant 0 : index
    %11 = vector.load %arg2[%c0_10, %c0_11, %c0_12] : memref<1x384x8xf32, #tpu.memory_space<vmem>>, vector<1x384x8xf32>
    %12 = vector.shape_cast %11 : vector<1x384x8xf32> to vector<384x8xf32>
    %c0_13 = arith.constant 0 : index
    %c0_14 = arith.constant 0 : index
    %13 = vector.load %arg7[%c0_13, %c0_14] : memref<8x128xf32, #tpu.memory_space<vmem>>, vector<8x128xf32>
    %cst_15 = arith.constant dense<0.000000e+00> : vector<384x128xf32>
    %14 = tpu.matmul %12, %13, %cst_15 {dimension_numbers = #tpu.dot_dimension_numbers<[1], [0], [0], [1], [0, 0, 1, 1], [], []>} : vector<384x8xf32>, vector<8x128xf32>, vector<384x128xf32> -> vector<384x128xf32>
    %15 = vector.broadcast %1 : vector<1x128xf32> to vector<384x128xf32>
    %16 = arith.addf %14, %15 : vector<384x128xf32>
    %c0_16 = arith.constant 0 : index
    %c0_17 = arith.constant 0 : index
    %c0_18 = arith.constant 0 : index
    %17 = vector.load %arg14[%c0_16, %c0_17, %c0_18] : memref<1x384x128xf32, #tpu.memory_space<vmem>>, vector<1x384x128xf32>
    %18 = vector.shape_cast %17 : vector<1x384x128xf32> to vector<384x128xf32>
    %19 = vector.shape_cast %16 : vector<384x128xf32> to vector<1x384x128xf32>
    tpu.vector_store %arg14[%c0_16, %c0_17, %c0_18], %19 {strides = array<i32>} : memref<1x384x128xf32, #tpu.memory_space<vmem>>, vector<1x384x128xf32>,
    %c0_19 = arith.constant 0 : index
    %c0_20 = arith.constant 0 : index
    %c0_21 = arith.constant 0 : index
    %20 = vector.load %arg3[%c0_19, %c0_20, %c0_21] : memref<1x128x128xf32, #tpu.memory_space<vmem>>, vector<1x128x128xf32>
    %21 = vector.shape_cast %20 : vector<1x128x128xf32> to vector<128x128xf32>
    %cst_22 = arith.constant dense<0.000000e+00> : vector<128x128xf32>
    %22 = tpu.matmul %21, %10, %cst_22 {dimension_numbers = #tpu.dot_dimension_numbers<[1], [0], [0], [1], [0, 0, 1, 1], [], []>} : vector<128x128xf32>, vector<128x128xf32>, vector<128x128xf32> -> vector<128x128xf32>
    %c0_23 = arith.constant 0 : index
    %c0_24 = arith.constant 0 : index
    %c0_25 = arith.constant 0 : index
    %23 = vector.load %arg4[%c0_23, %c0_24, %c0_25] : memref<1x128x128xf32, #tpu.memory_space<vmem>>, vector<1x128x128xf32>
    %24 = vector.shape_cast %23 : vector<1x128x128xf32> to vector<128x128xf32>
    %c0_26 = arith.constant 0 : index
    %c0_27 = arith.constant 0 : index
    %25 = vector.load %arg5[%c0_26, %c0_27] : memref<8x128xf32, #tpu.memory_space<vmem>>, vector<8x128xf32>
    %c0_28 = arith.constant 0 : index
    %c0_29 = arith.constant 0 : index
    %26 = vector.load %arg8[%c0_28, %c0_29] : memref<128x128xf32, #tpu.memory_space<vmem>>, vector<128x128xf32>
    %cst_30 = arith.constant dense<0.000000e+00> : vector<8x128xf32>
    %27 = tpu.matmul %25, %10, %cst_30 {dimension_numbers = #tpu.dot_dimension_numbers<[1], [0], [0], [1], [0, 0, 1, 1], [], []>} : vector<8x128xf32>, vector<128x128xf32>, vector<8x128xf32> -> vector<8x128xf32>
    %c0_31 = arith.constant 0 : index
    %c0_32 = arith.constant 0 : index
    %28 = vector.load %arg9[%c0_31, %c0_32] : memref<384x128xf32, #tpu.memory_space<vmem>>, vector<128x128xf32>
    %cst_33 = arith.constant dense<0.000000e+00> : vector<8x128xf32>
    %29 = tpu.matmul %27, %28, %cst_33 {dimension_numbers = #tpu.dot_dimension_numbers<[1], [0], [0], [1], [0, 0, 1, 1], [], []>} : vector<8x128xf32>, vector<128x128xf32>, vector<8x128xf32> -> vector<8x128xf32>
    %cst_34 = arith.constant dense<0.000000e+00> : vector<128x128xf32>
    %30 = tpu.matmul %24, %22, %cst_34 {dimension_numbers = #tpu.dot_dimension_numbers<[1], [0], [0], [1], [0, 0, 1, 1], [], []>} : vector<128x128xf32>, vector<128x128xf32>, vector<128x128xf32> -> vector<128x128xf32>
    %cst_35 = arith.constant dense<0.000000e+00> : vector<128x128xf32>
    %31 = tpu.matmul %30, %26, %cst_35 {dimension_numbers = #tpu.dot_dimension_numbers<[1], [0], [0], [1], [0, 0, 1, 1], [], []>} : vector<128x128xf32>, vector<128x128xf32>, vector<128x128xf32> -> vector<128x128xf32>
    %32 = vector.broadcast %2 : vector<1x128xf32> to vector<128x128xf32>
    %33 = arith.addf %31, %32 : vector<128x128xf32>
    %cst_36 = arith.constant 0.000000e+00 : f32
    %34 = vector.broadcast %cst_36 : f32 to vector<128x128xf32>
    %35 = arith.cmpf ogt, %33, %34 : vector<128x128xf32>
    %cst_37 = arith.constant 0.00999999977 : f32
    %36 = vector.broadcast %cst_37 : f32 to vector<128x128xf32>
    %37 = arith.mulf %36, %33 : vector<128x128xf32>
    %38 = arith.select %35, %33, %37 : vector<128x128xi1>, vector<128x128xf32>
    %cst_38 = arith.constant dense<0.000000e+00> : vector<8x128xf32>
    %39 = tpu.matmul %25, %38, %cst_38 {dimension_numbers = #tpu.dot_dimension_numbers<[1], [0], [0], [1], [0, 0, 1, 1], [], []>} : vector<8x128xf32>, vector<128x128xf32>, vector<8x128xf32> -> vector<8x128xf32>
    %c128 = arith.constant 128 : index
    %c0_39 = arith.constant 0 : index
    %40 = vector.load %arg9[%c128, %c0_39] : memref<384x128xf32, #tpu.memory_space<vmem>>, vector<128x128xf32>
    %cst_40 = arith.constant dense<0.000000e+00> : vector<8x128xf32>
    %41 = tpu.matmul %39, %40, %cst_40 {dimension_numbers = #tpu.dot_dimension_numbers<[1], [0], [0], [1], [0, 0, 1, 1], [], []>} : vector<8x128xf32>, vector<128x128xf32>, vector<8x128xf32> -> vector<8x128xf32>
    %42 = arith.addf %29, %41 : vector<8x128xf32>
    %cst_41 = arith.constant dense<0.000000e+00> : vector<128x128xf32>
    %43 = tpu.matmul %24, %38, %cst_41 {dimension_numbers = #tpu.dot_dimension_numbers<[1], [0], [0], [1], [0, 0, 1, 1], [], []>} : vector<128x128xf32>, vector<128x128xf32>, vector<128x128xf32> -> vector<128x128xf32>
    %cst_42 = arith.constant dense<0.000000e+00> : vector<128x128xf32>
    %44 = tpu.matmul %43, %26, %cst_42 {dimension_numbers = #tpu.dot_dimension_numbers<[1], [0], [0], [1], [0, 0, 1, 1], [], []>} : vector<128x128xf32>, vector<128x128xf32>, vector<128x128xf32> -> vector<128x128xf32>
    %45 = vector.broadcast %2 : vector<1x128xf32> to vector<128x128xf32>
    %46 = arith.addf %44, %45 : vector<128x128xf32>
    %cst_43 = arith.constant 0.000000e+00 : f32
    %47 = vector.broadcast %cst_43 : f32 to vector<128x128xf32>
    %48 = arith.cmpf ogt, %46, %47 : vector<128x128xf32>
    %cst_44 = arith.constant 0.00999999977 : f32
    %49 = vector.broadcast %cst_44 : f32 to vector<128x128xf32>
    %50 = arith.mulf %49, %46 : vector<128x128xf32>
    %51 = arith.select %48, %46, %50 : vector<128x128xi1>, vector<128x128xf32>
    %cst_45 = arith.constant dense<0.000000e+00> : vector<8x128xf32>
    %52 = tpu.matmul %25, %51, %cst_45 {dimension_numbers = #tpu.dot_dimension_numbers<[1], [0], [0], [1], [0, 0, 1, 1], [], []>} : vector<8x128xf32>, vector<128x128xf32>, vector<8x128xf32> -> vector<8x128xf32>
    %c256 = arith.constant 256 : index
    %c0_46 = arith.constant 0 : index
    %53 = vector.load %arg9[%c256, %c0_46] : memref<384x128xf32, #tpu.memory_space<vmem>>, vector<128x128xf32>
    %cst_47 = arith.constant dense<0.000000e+00> : vector<8x128xf32>
    %54 = tpu.matmul %52, %53, %cst_47 {dimension_numbers = #tpu.dot_dimension_numbers<[1], [0], [0], [1], [0, 0, 1, 1], [], []>} : vector<8x128xf32>, vector<128x128xf32>, vector<8x128xf32> -> vector<8x128xf32>
    %55 = arith.addf %42, %54 : vector<8x128xf32>
    %56 = vector.broadcast %3 : vector<1x128xf32> to vector<8x128xf32>
    %57 = arith.addf %55, %56 : vector<8x128xf32>
    %c0_48 = arith.constant 0 : index
    %c0_49 = arith.constant 0 : index
    %c0_50 = arith.constant 0 : index
    %58 = vector.load %arg13[%c0_48, %c0_49, %c0_50] : memref<1x8x128xf32, #tpu.memory_space<vmem>>, vector<1x8x128xf32>
    %59 = vector.shape_cast %58 : vector<1x8x128xf32> to vector<8x128xf32>
    %60 = vector.shape_cast %57 : vector<8x128xf32> to vector<1x8x128xf32>
    tpu.vector_store %arg13[%c0_48, %c0_49, %c0_50], %60 {strides = array<i32>} : memref<1x8x128xf32, #tpu.memory_space<vmem>>, vector<1x8x128xf32>,
    %c0_51 = arith.constant 0 : index
    %c0_52 = arith.constant 0 : index
    %61 = vector.load %arg10[%c0_51, %c0_52] : memref<128x128xf32, #tpu.memory_space<vmem>>, vector<128x128xf32>
    %cst_53 = arith.constant dense<0.000000e+00> : vector<8x128xf32>
    %62 = tpu.matmul %57, %61, %cst_53 {dimension_numbers = #tpu.dot_dimension_numbers<[1], [0], [0], [1], [0, 0, 1, 1], [], []>} : vector<8x128xf32>, vector<128x128xf32>, vector<8x128xf32> -> vector<8x128xf32>
    %63 = vector.broadcast %4 : vector<1x128xf32> to vector<8x128xf32>
    %64 = arith.addf %62, %63 : vector<8x128xf32>
    %cst_54 = arith.constant dense<0xFF800000> : vector<8xf32>
    %65 = vector.multi_reduction <maximumf>, %64, %cst_54 [1] : vector<8x128xf32> to vector<8xf32>
    %66 = vector.shape_cast %65 : vector<8xf32> to vector<8x1xf32>
    %67 = vector.broadcast %66 : vector<8x1xf32> to vector<8x128xf32>
    %68 = arith.subf %64, %67 : vector<8x128xf32>
    %69 = math.exp %68 : vector<8x128xf32>
    %cst_55 = arith.constant dense<0.000000e+00> : vector<8xf32>
    %70 = vector.multi_reduction <add>, %69, %cst_55 [1] : vector<8x128xf32> to vector<8xf32>
    %71 = vector.shape_cast %70 : vector<8xf32> to vector<8x1xf32>
    %72 = vector.broadcast %71 : vector<8x1xf32> to vector<8x128xf32>
    %73 = arith.divf %69, %72 : vector<8x128xf32>
    %c0_56 = arith.constant 0 : index
    %c0_57 = arith.constant 0 : index
    %c0_58 = arith.constant 0 : index
    %74 = vector.load %arg12[%c0_56, %c0_57, %c0_58] : memref<1x8x128xf32, #tpu.memory_space<vmem>>, vector<1x8x128xf32>
    %75 = vector.shape_cast %74 : vector<1x8x128xf32> to vector<8x128xf32>
    %76 = vector.shape_cast %73 : vector<8x128xf32> to vector<1x8x128xf32>
    tpu.vector_store %arg12[%c0_56, %c0_57, %c0_58], %76 {strides = array<i32>} : memref<1x8x128xf32, #tpu.memory_space<vmem>>, vector<1x8x128xf32>,
    return
  }
  func.func @transform_0(%arg0: i32) -> (i32, i32, i32) {
    %c0_i32 = arith.constant 0 : i32
    %c0_i32_0 = arith.constant 0 : i32
    %c0_i32_1 = arith.constant 0 : i32
    return %arg0, %c0_i32, %c0_i32_0 : i32, i32, i32
  }
  func.func @transform_1(%arg0: i32) -> (i32, i32, i32) {
    %c0_i32 = arith.constant 0 : i32
    %c0_i32_0 = arith.constant 0 : i32
    %c0_i32_1 = arith.constant 0 : i32
    return %arg0, %c0_i32, %c0_i32_0 : i32, i32, i32
  }
  func.func @transform_2(%arg0: i32) -> (i32, i32, i32) {
    %c0_i32 = arith.constant 0 : i32
    %c0_i32_0 = arith.constant 0 : i32
    %c0_i32_1 = arith.constant 0 : i32
    return %arg0, %c0_i32, %c0_i32_0 : i32, i32, i32
  }
  func.func @transform_3(%arg0: i32) -> (i32, i32, i32) {
    %c0_i32 = arith.constant 0 : i32
    %c0_i32_0 = arith.constant 0 : i32
    %c0_i32_1 = arith.constant 0 : i32
    return %arg0, %c0_i32, %c0_i32_0 : i32, i32, i32
  }
  func.func @transform_4(%arg0: i32) -> (i32, i32) {
    %c0_i32 = arith.constant 0 : i32
    %c0_i32_0 = arith.constant 0 : i32
    %c0_i32_1 = arith.constant 0 : i32
    return %c0_i32, %c0_i32_0 : i32, i32
  }
  func.func @transform_5(%arg0: i32) -> (i32, i32) {
    %c0_i32 = arith.constant 0 : i32
    %c0_i32_0 = arith.constant 0 : i32
    %c0_i32_1 = arith.constant 0 : i32
    return %c0_i32, %c0_i32_0 : i32, i32
  }
  func.func @transform_6(%arg0: i32) -> (i32, i32) {
    %c0_i32 = arith.constant 0 : i32
    %c0_i32_0 = arith.constant 0 : i32
    %c0_i32_1 = arith.constant 0 : i32
    return %c0_i32, %c0_i32_0 : i32, i32
  }
  func.func @transform_7(%arg0: i32) -> (i32, i32) {
    %c0_i32 = arith.constant 0 : i32
    %c0_i32_0 = arith.constant 0 : i32
    %c0_i32_1 = arith.constant 0 : i32
    return %c0_i32, %c0_i32_0 : i32, i32
  }
  func.func @transform_8(%arg0: i32) -> (i32, i32) {
    %c0_i32 = arith.constant 0 : i32
    %c0_i32_0 = arith.constant 0 : i32
    %c0_i32_1 = arith.constant 0 : i32
    return %c0_i32, %c0_i32_0 : i32, i32
  }
  func.func @transform_9(%arg0: i32) -> (i32, i32) {
    %c0_i32 = arith.constant 0 : i32
    %c0_i32_0 = arith.constant 0 : i32
    %c0_i32_1 = arith.constant 0 : i32
    return %c0_i32, %c0_i32_0 : i32, i32
  }
  func.func @transform_10(%arg0: i32) -> (i32, i32) {
    %c0_i32 = arith.constant 0 : i32
    %c0_i32_0 = arith.constant 0 : i32
    %c0_i32_1 = arith.constant 0 : i32
    return %c0_i32, %c0_i32_0 : i32, i32
  }
  func.func @transform_11(%arg0: i32) -> (i32, i32, i32) {
    %c0_i32 = arith.constant 0 : i32
    %c0_i32_0 = arith.constant 0 : i32
    %c0_i32_1 = arith.constant 0 : i32
    return %arg0, %c0_i32, %c0_i32_0 : i32, i32, i32
  }
  func.func @transform_12(%arg0: i32) -> (i32, i32, i32) {
    %c0_i32 = arith.constant 0 : i32
    %c0_i32_0 = arith.constant 0 : i32
    %c0_i32_1 = arith.constant 0 : i32
    return %arg0, %c0_i32, %c0_i32_0 : i32, i32, i32
  }
  func.func @transform_13(%arg0: i32) -> (i32, i32, i32) {
    %c0_i32 = arith.constant 0 : i32
    %c0_i32_0 = arith.constant 0 : i32
    %c0_i32_1 = arith.constant 0 : i32
    return %arg0, %c0_i32, %c0_i32_0 : i32, i32, i32
  }
}

</mosaic_0001>

<llo_original>
// kernel: gcn_model_forward.1
$region0: #{gcn_model_forward.1}
  #allocation0 [shape = 'u32[]', space=smem, size = 0x4, offset = 0x4, fixed_abs, tag = 'smem constant byte address 0x4 - core index']
  #allocation1 [shape = 'u32[72,128]{1,0:T(1,128)}', space=vmem, size = 0x9000, scoped, tag = 'internal scratch']
  %s0 = inlined_call_operand.vmem [shape: f32[1,128,12], index: 0, kind: input, shape index: {}]
  %s1 = inlined_call_operand.vmem [shape: f32[1,384,8], index: 1, kind: input, shape index: {}]
  %s2 = inlined_call_operand.vmem [shape: f32[1,128,128], index: 2, kind: input, shape index: {}]
  %s3 = inlined_call_operand.vmem [shape: f32[1,128,128], index: 3, kind: input, shape index: {}]
  %s4 = inlined_call_operand.vmem [shape: f32[8,128], index: 4, kind: input, shape index: {}]
  %s5 = inlined_call_operand.vmem [shape: f32[12,128], index: 5, kind: input, shape index: {}]
  %s6 = inlined_call_operand.vmem [shape: f32[8,128], index: 6, kind: input, shape index: {}]
  %s7 = inlined_call_operand.vmem [shape: f32[128,128], index: 7, kind: input, shape index: {}]
  %s8 = inlined_call_operand.vmem [shape: f32[384,128], index: 8, kind: input, shape index: {}]
  %s9 = inlined_call_operand.vmem [shape: f32[128,128], index: 9, kind: input, shape index: {}]
  %s10 = inlined_call_operand.vmem [shape: f32[8,128], index: 10, kind: input, shape index: {}]
  %s11 = inlined_call_operand.vmem [shape: f32[1,8,128], index: 11, kind: output, shape index: {0}]
  %s12 = inlined_call_operand.vmem [shape: f32[1,8,128], index: 12, kind: output, shape index: {1}]
  %s13 = inlined_call_operand.vmem [shape: f32[1,384,128], index: 13, kind: output, shape index: {2}]
  %14 = xla_tuple %s11, %s12, %s13
  %s15 = sld [smem:[#allocation0]]
  $region70: #{gcn_model_forward.1} parent=0
    _
  %s17 = ssub.s32 1, %s15
  %s18 = scalar_select 0, %s17, %s15
  // Predicated region
  $region2: #{gcn_model_forward.1} parent=0 // pred_check
    _
  $region3: #{gcn_model_forward.1} parent=0 // pred_check_branch
    %20 = sbr.rel (0) target = $region5
  $region4: #{gcn_model_forward.1} parent=0 // pred_region
    _
  $region5: #{gcn_model_forward.1} parent=0 // pred_fallthru
    _
  // Predicated region
  $region6: #{gcn_model_forward.1} parent=0 // pred_check
    _
  $region7: #{gcn_model_forward.1} parent=0 // pred_check_branch
    %22 = sbr.rel (0) target = $region9
  $region8: #{gcn_model_forward.1} parent=0 // pred_region
    _
  $region9: #{gcn_model_forward.1} parent=0 // pred_fallthru
    _
  // Predicated region
  $region10: #{gcn_model_forward.1} parent=0 // pred_check
    _
  $region11: #{gcn_model_forward.1} parent=0 // pred_check_branch
    %24 = sbr.rel (0) target = $region13
  $region12: #{gcn_model_forward.1} parent=0 // pred_region
    _
  $region13: #{gcn_model_forward.1} parent=0 // pred_fallthru
    _
  // Predicated region
  $region14: #{gcn_model_forward.1} parent=0 // pred_check
    _
  $region15: #{gcn_model_forward.1} parent=0 // pred_check_branch
    %26 = sbr.rel (0) target = $region17
  $region16: #{gcn_model_forward.1} parent=0 // pred_region
    _
  $region17: #{gcn_model_forward.1} parent=0 // pred_fallthru
    _
  // Predicated region
  $region18: #{gcn_model_forward.1} parent=0 // pred_check
    _
  $region19: #{gcn_model_forward.1} parent=0 // pred_check_branch
    %28 = sbr.rel (0) target = $region21
  $region20: #{gcn_model_forward.1} parent=0 // pred_region
    _
  $region21: #{gcn_model_forward.1} parent=0 // pred_fallthru
    _
  // Predicated region
  $region22: #{gcn_model_forward.1} parent=0 // pred_check
    _
  $region23: #{gcn_model_forward.1} parent=0 // pred_check_branch
    %30 = sbr.rel (0) target = $region25
  $region24: #{gcn_model_forward.1} parent=0 // pred_region
    _
  $region25: #{gcn_model_forward.1} parent=0 // pred_fallthru
    _
  // Predicated region
  $region26: #{gcn_model_forward.1} parent=0 // pred_check
    _
  $region27: #{gcn_model_forward.1} parent=0 // pred_check_branch
    %32 = sbr.rel (0) target = $region29
  $region28: #{gcn_model_forward.1} parent=0 // pred_region
    _
  $region29: #{gcn_model_forward.1} parent=0 // pred_fallthru
    _
  // Predicated region
  $region30: #{gcn_model_forward.1} parent=0 // pred_check
    _
  $region31: #{gcn_model_forward.1} parent=0 // pred_check_branch
    %34 = sbr.rel (0) target = $region33
  $region32: #{gcn_model_forward.1} parent=0 // pred_region
    _
  $region33: #{gcn_model_forward.1} parent=0 // pred_fallthru
    _
  // Predicated region
  $region34: #{gcn_model_forward.1} parent=0 // pred_check
    _
  $region35: #{gcn_model_forward.1} parent=0 // pred_check_branch
    %36 = sbr.rel (0) target = $region37
  $region36: #{gcn_model_forward.1} parent=0 // pred_region
    _
  $region37: #{gcn_model_forward.1} parent=0 // pred_fallthru
    _
  // Predicated region
  $region38: #{gcn_model_forward.1} parent=0 // pred_check
    _
  $region39: #{gcn_model_forward.1} parent=0 // pred_check_branch
    %38 = sbr.rel (0) target = $region41
  $region40: #{gcn_model_forward.1} parent=0 // pred_region
    _
  $region41: #{gcn_model_forward.1} parent=0 // pred_fallthru
    _
  // Predicated region
  $region42: #{gcn_model_forward.1} parent=0 // pred_check
    _
  $region43: #{gcn_model_forward.1} parent=0 // pred_check_branch
    %40 = sbr.rel (0) target = $region45
  $region44: #{gcn_model_forward.1} parent=0 // pred_region
    _
  $region45: #{gcn_model_forward.1} parent=0 // pred_fallthru
    _
  %v41 = vld [vmem:[%s10] sm:$0x1]
  %v42 = vld [vmem:[%s10 + $0x1] sm:$0x1]
  %v43 = vld [vmem:[%s10 + $0x2] sm:$0x1]
  %v44 = vld [vmem:[%s10 + $0x3] sm:$0x1]
  %v45 = vld [vmem:[%s10 + $0x4] sm:$0x1]
  %v46 = vld [vmem:[%s0] sm:$0xff]
  %v47 = vld [vmem:[%s0 + $0x8] sm:$0xff]
  %v48 = vld [vmem:[%s0 + $0x10] sm:$0xff]
  %v49 = vld [vmem:[%s0 + $0x18] sm:$0xff]
  %v50 = vld [vmem:[%s0 + $0x20] sm:$0xff]
  %v51 = vld [vmem:[%s0 + $0x28] sm:$0xff]
  %v52 = vld [vmem:[%s0 + $0x30] sm:$0xff]
  %v53 = vld [vmem:[%s0 + $0x38] sm:$0xff]
  %v54 = vld [vmem:[%s0 + $0x40] sm:$0xff]
  %v55 = vld [vmem:[%s0 + $0x48] sm:$0xff]
  %v56 = vld [vmem:[%s0 + $0x50] sm:$0xff]
  %v57 = vld [vmem:[%s0 + $0x58] sm:$0xff]
  %v58 = vld [vmem:[%s0 + $0x60] sm:$0xff]
  %v59 = vld [vmem:[%s0 + $0x68] sm:$0xff]
  %v60 = vld [vmem:[%s0 + $0x70] sm:$0xff]
  %v61 = vld [vmem:[%s0 + $0x78] sm:$0xff]
  %v62 = vld [vmem:[%s5] sm:$0xff]
  %v63 = vld [vmem:[%s5 + $0x8] sm:$0xf]
  %v64 = vperm.slane %v41, 0
  %vm65 = vcmask 97280
  %v67 = vsel %vm65, %v46, 0
  %v70 = vsel %vm65, %v47, 0
  %v73 = vsel %vm65, %v48, 0
  %v76 = vsel %vm65, %v49, 0
  %v79 = vsel %vm65, %v50, 0
  %v82 = vsel %vm65, %v51, 0
  %v85 = vsel %vm65, %v52, 0
  %v88 = vsel %vm65, %v53, 0
  %v91 = vsel %vm65, %v54, 0
  %v94 = vsel %vm65, %v55, 0
  %v97 = vsel %vm65, %v56, 0
  %v100 = vsel %vm65, %v57, 0
  %v103 = vsel %vm65, %v58, 0
  %v106 = vsel %vm65, %v59, 0
  %v109 = vsel %vm65, %v60, 0
  %v112 = vsel %vm65, %v61, 0
  %vm114 = vcmask 1043456
  %v116 = vsel %vm114, %v63, 0
  %118 = vmatpush.msra.mxu0 0.0
  %119 = vmatpush.msra.mxu0 0.0
  %120 = vmatpush.msra.mxu0 0.0
  %121 = vmatpush.msra.mxu0 0.0
  %122 = vmatpush.msra.mxu0 0.0
  %123 = vmatpush.msra.mxu0 0.0
  %124 = vmatpush.msra.mxu0 0.0
  %125 = vmatpush.msra.mxu0 0.0
  %126 = vmatpush.msra.mxu0 0.0
  %127 = vmatpush.msra.mxu0 0.0
  %128 = vmatpush.msra.mxu0 0.0
  %129 = vmatpush.msra.mxu0 0.0
  %130 = vmatpush.msra.mxu0 0.0
  %131 = vmatpush.msra.mxu0 0.0
  %132 = vmatpush.msra.mxu0 %v116
  %133 = vmatpush.msra.mxu0 %v62
  %134 = vmatmul.f32.gmra.mxu0 %v67
  %v135 = vpop.f32.mrf.mxu0
  %v136 = vadd.f32 %v64, %v135
  %137 = vmatmul.f32.gmra.mxu0 %v70
  %v138 = vpop.f32.mrf.mxu0
  %v139 = vadd.f32 %v64, %v138
  %140 = vmatmul.f32.gmra.mxu0 %v73
  %v141 = vpop.f32.mrf.mxu0
  %v142 = vadd.f32 %v64, %v141
  %143 = vmatmul.f32.gmra.mxu0 %v76
  %v144 = vpop.f32.mrf.mxu0
  %v145 = vadd.f32 %v64, %v144
  %146 = vmatmul.f32.gmra.mxu0 %v79
  %v147 = vpop.f32.mrf.mxu0
  %v148 = vadd.f32 %v64, %v147
  %149 = vmatmul.f32.gmra.mxu0 %v82
  %v150 = vpop.f32.mrf.mxu0
  %v151 = vadd.f32 %v64, %v150
  %152 = vmatmul.f32.gmra.mxu0 %v85
  %v153 = vpop.f32.mrf.mxu0
  %v154 = vadd.f32 %v64, %v153
  %155 = vmatmul.f32.gmra.mxu0 %v88
  %v156 = vpop.f32.mrf.mxu0
  %v157 = vadd.f32 %v64, %v156
  %158 = vmatmul.f32.gmra.mxu0 %v91
  %v159 = vpop.f32.mrf.mxu0
  %v160 = vadd.f32 %v64, %v159
  %161 = vmatmul.f32.gmra.mxu0 %v94
  %v162 = vpop.f32.mrf.mxu0
  %v163 = vadd.f32 %v64, %v162
  %164 = vmatmul.f32.gmra.mxu0 %v97
  %v165 = vpop.f32.mrf.mxu0
  %v166 = vadd.f32 %v64, %v165
  %167 = vmatmul.f32.gmra.mxu0 %v100
  %v168 = vpop.f32.mrf.mxu0
  %v169 = vadd.f32 %v64, %v168
  %170 = vmatmul.f32.gmra.mxu0 %v103
  %v171 = vpop.f32.mrf.mxu0
  %v172 = vadd.f32 %v64, %v171
  %173 = vmatmul.f32.gmra.mxu0 %v106
  %v174 = vpop.f32.mrf.mxu0
  %v175 = vadd.f32 %v64, %v174
  %176 = vmatmul.f32.gmra.mxu0 %v109
  %v177 = vpop.f32.mrf.mxu0
  %v178 = vadd.f32 %v64, %v177
  %179 = vmatmul.f32.gmra.mxu0 %v112
  %v180 = vpop.f32.mrf.mxu0
  %v181 = vadd.f32 %v64, %v180
  %182 = vdwg.mxu0
  %v183 = vld [vmem:[%s1] sm:$0xff]
  %v184 = vld [vmem:[%s1 + $0x8] sm:$0xff]
  %v185 = vld [vmem:[%s1 + $0x10] sm:$0xff]
  %v186 = vld [vmem:[%s1 + $0x18] sm:$0xff]
  %v187 = vld [vmem:[%s1 + $0x20] sm:$0xff]
  %v188 = vld [vmem:[%s1 + $0x28] sm:$0xff]
  %v189 = vld [vmem:[%s1 + $0x30] sm:$0xff]
  %v190 = vld [vmem:[%s1 + $0x38] sm:$0xff]
  %v191 = vld [vmem:[%s1 + $0x40] sm:$0xff]
  %v192 = vld [vmem:[%s1 + $0x48] sm:$0xff]
  %v193 = vld [vmem:[%s1 + $0x50] sm:$0xff]
  %v194 = vld [vmem:[%s1 + $0x58] sm:$0xff]
  %v195 = vld [vmem:[%s1 + $0x60] sm:$0xff]
  %v196 = vld [vmem:[%s1 + $0x68] sm:$0xff]
  %v197 = vld [vmem:[%s1 + $0x70] sm:$0xff]
  %v198 = vld [vmem:[%s1 + $0x78] sm:$0xff]
  %v199 = vld [vmem:[%s1 + $0x80] sm:$0xff]
  %v200 = vld [vmem:[%s1 + $0x88] sm:$0xff]
  %v201 = vld [vmem:[%s1 + $0x90] sm:$0xff]
  %v202 = vld [vmem:[%s1 + $0x98] sm:$0xff]
  %v203 = vld [vmem:[%s1 + $0xa0] sm:$0xff]
  %v204 = vld [vmem:[%s1 + $0xa8] sm:$0xff]
  %v205 = vld [vmem:[%s1 + $0xb0] sm:$0xff]
  %v206 = vld [vmem:[%s1 + $0xb8] sm:$0xff]
  %v207 = vld [vmem:[%s1 + $0xc0] sm:$0xff]
  %v208 = vld [vmem:[%s1 + $0xc8] sm:$0xff]
  %v209 = vld [vmem:[%s1 + $0xd0] sm:$0xff]
  %v210 = vld [vmem:[%s1 + $0xd8] sm:$0xff]
  %v211 = vld [vmem:[%s1 + $0xe0] sm:$0xff]
  %v212 = vld [vmem:[%s1 + $0xe8] sm:$0xff]
  %v213 = vld [vmem:[%s1 + $0xf0] sm:$0xff]
  %v214 = vld [vmem:[%s1 + $0xf8] sm:$0xff]
  %v215 = vld [vmem:[%s1 + $0x100] sm:$0xff]
  %v216 = vld [vmem:[%s1 + $0x108] sm:$0xff]
  %v217 = vld [vmem:[%s1 + $0x110] sm:$0xff]
  %v218 = vld [vmem:[%s1 + $0x118] sm:$0xff]
  %v219 = vld [vmem:[%s1 + $0x120] sm:$0xff]
  %v220 = vld [vmem:[%s1 + $0x128] sm:$0xff]
  %v221 = vld [vmem:[%s1 + $0x130] sm:$0xff]
  %v222 = vld [vmem:[%s1 + $0x138] sm:$0xff]
  %v223 = vld [vmem:[%s1 + $0x140] sm:$0xff]
  %v224 = vld [vmem:[%s1 + $0x148] sm:$0xff]
  %v225 = vld [vmem:[%s1 + $0x150] sm:$0xff]
  %v226 = vld [vmem:[%s1 + $0x158] sm:$0xff]
  %v227 = vld [vmem:[%s1 + $0x160] sm:$0xff]
  %v228 = vld [vmem:[%s1 + $0x168] sm:$0xff]
  %v229 = vld [vmem:[%s1 + $0x170] sm:$0xff]
  %v230 = vld [vmem:[%s1 + $0x178] sm:$0xff]
  %v231 = vld [vmem:[%s6] sm:$0xff]
  %v232 = vperm.slane %v42, 0
  %vm233 = vcmask 64512
  %v235 = vsel %vm233, %v183, 0
  %v238 = vsel %vm233, %v184, 0
  %v241 = vsel %vm233, %v185, 0
  %v244 = vsel %vm233, %v186, 0
  %v247 = vsel %vm233, %v187, 0
  %v250 = vsel %vm233, %v188, 0
  %v253 = vsel %vm233, %v189, 0
  %v256 = vsel %vm233, %v190, 0
  %v259 = vsel %vm233, %v191, 0
  %v262 = vsel %vm233, %v192, 0
  %v265 = vsel %vm233, %v193, 0
  %v268 = vsel %vm233, %v194, 0
  %v271 = vsel %vm233, %v195, 0
  %v274 = vsel %vm233, %v196, 0
  %v277 = vsel %vm233, %v197, 0
  %v280 = vsel %vm233, %v198, 0
  %v283 = vsel %vm233, %v199, 0
  %v286 = vsel %vm233, %v200, 0
  %v289 = vsel %vm233, %v201, 0
  %v292 = vsel %vm233, %v202, 0
  %v295 = vsel %vm233, %v203, 0
  %v298 = vsel %vm233, %v204, 0
  %v301 = vsel %vm233, %v205, 0
  %v304 = vsel %vm233, %v206, 0
  %v307 = vsel %vm233, %v207, 0
  %v310 = vsel %vm233, %v208, 0
  %v313 = vsel %vm233, %v209, 0
  %v316 = vsel %vm233, %v210, 0
  %v319 = vsel %vm233, %v211, 0
  %v322 = vsel %vm233, %v212, 0
  %v325 = vsel %vm233, %v213, 0
  %v328 = vsel %vm233, %v214, 0
  %v331 = vsel %vm233, %v215, 0
  %v334 = vsel %vm233, %v216, 0
  %v337 = vsel %vm233, %v217, 0
  %v340 = vsel %vm233, %v218, 0
  %v343 = vsel %vm233, %v219, 0
  %v346 = vsel %vm233, %v220, 0
  %v349 = vsel %vm233, %v221, 0
  %v352 = vsel %vm233, %v222, 0
  %v355 = vsel %vm233, %v223, 0
  %v358 = vsel %vm233, %v224, 0
  %v361 = vsel %vm233, %v225, 0
  %v364 = vsel %vm233, %v226, 0
  %v367 = vsel %vm233, %v227, 0
  %v370 = vsel %vm233, %v228, 0
  %v373 = vsel %vm233, %v229, 0
  %v376 = vsel %vm233, %v230, 0
  %378 = vmatpush.msra.mxu0 0.0
  %379 = vmatpush.msra.mxu0 0.0
  %380 = vmatpush.msra.mxu0 0.0
  %381 = vmatpush.msra.mxu0 0.0
  %382 = vmatpush.msra.mxu0 0.0
  %383 = vmatpush.msra.mxu0 0.0
  %384 = vmatpush.msra.mxu0 0.0
  %385 = vmatpush.msra.mxu0 0.0
  %386 = vmatpush.msra.mxu0 0.0
  %387 = vmatpush.msra.mxu0 0.0
  %388 = vmatpush.msra.mxu0 0.0
  %389 = vmatpush.msra.mxu0 0.0
  %390 = vmatpush.msra.mxu0 0.0
  %391 = vmatpush.msra.mxu0 0.0
  %392 = vmatpush.msra.mxu0 0.0
  %393 = vmatpush.msra.mxu0 %v231
  %394 = vmatmul.f32.gmra.mxu0 %v235
  %v395 = vpop.f32.mrf.mxu0
  %v396 = vadd.f32 %v232, %v395
  %397 = vmatmul.f32.gmra.mxu0 %v238
  %v398 = vpop.f32.mrf.mxu0
  %v399 = vadd.f32 %v232, %v398
  %400 = vmatmul.f32.gmra.mxu0 %v241
  %v401 = vpop.f32.mrf.mxu0
  %v402 = vadd.f32 %v232, %v401
  %403 = vmatmul.f32.gmra.mxu0 %v244
  %v404 = vpop.f32.mrf.mxu0
  %v405 = vadd.f32 %v232, %v404
  %406 = vmatmul.f32.gmra.mxu0 %v247
  %v407 = vpop.f32.mrf.mxu0
  %v408 = vadd.f32 %v232, %v407
  %409 = vmatmul.f32.gmra.mxu0 %v250
  %v410 = vpop.f32.mrf.mxu0
  %v411 = vadd.f32 %v232, %v410
  %412 = vmatmul.f32.gmra.mxu0 %v253
  %v413 = vpop.f32.mrf.mxu0
  %v414 = vadd.f32 %v232, %v413
  %415 = vmatmul.f32.gmra.mxu0 %v256
  %v416 = vpop.f32.mrf.mxu0
  %v417 = vadd.f32 %v232, %v416
  %418 = vmatmul.f32.gmra.mxu0 %v259
  %v419 = vpop.f32.mrf.mxu0
  %v420 = vadd.f32 %v232, %v419
  %421 = vmatmul.f32.gmra.mxu0 %v262
  %v422 = vpop.f32.mrf.mxu0
  %v423 = vadd.f32 %v232, %v422
  %424 = vmatmul.f32.gmra.mxu0 %v265
  %v425 = vpop.f32.mrf.mxu0
  %v426 = vadd.f32 %v232, %v425
  %427 = vmatmul.f32.gmra.mxu0 %v268
  %v428 = vpop.f32.mrf.mxu0
  %v429 = vadd.f32 %v232, %v428
  %430 = vmatmul.f32.gmra.mxu0 %v271
  %v431 = vpop.f32.mrf.mxu0
  %v432 = vadd.f32 %v232, %v431
  %433 = vmatmul.f32.gmra.mxu0 %v274
  %v434 = vpop.f32.mrf.mxu0
  %v435 = vadd.f32 %v232, %v434
  %436 = vmatmul.f32.gmra.mxu0 %v277
  %v437 = vpop.f32.mrf.mxu0
  %v438 = vadd.f32 %v232, %v437
  %439 = vmatmul.f32.gmra.mxu0 %v280
  %v440 = vpop.f32.mrf.mxu0
  %v441 = vadd.f32 %v232, %v440
  %442 = vmatmul.f32.gmra.mxu0 %v283
  %v443 = vpop.f32.mrf.mxu0
  %v444 = vadd.f32 %v232, %v443
  %445 = vmatmul.f32.gmra.mxu0 %v286
  %v446 = vpop.f32.mrf.mxu0
  %v447 = vadd.f32 %v232, %v446
  %448 = vmatmul.f32.gmra.mxu0 %v289
  %v449 = vpop.f32.mrf.mxu0
  %v450 = vadd.f32 %v232, %v449
  %451 = vmatmul.f32.gmra.mxu0 %v292
  %v452 = vpop.f32.mrf.mxu0
  %v453 = vadd.f32 %v232, %v452
  %454 = vmatmul.f32.gmra.mxu0 %v295
  %v455 = vpop.f32.mrf.mxu0
  %v456 = vadd.f32 %v232, %v455
  %457 = vmatmul.f32.gmra.mxu0 %v298
  %v458 = vpop.f32.mrf.mxu0
  %v459 = vadd.f32 %v232, %v458
  %460 = vmatmul.f32.gmra.mxu0 %v301
  %v461 = vpop.f32.mrf.mxu0
  %v462 = vadd.f32 %v232, %v461
  %463 = vmatmul.f32.gmra.mxu0 %v304
  %v464 = vpop.f32.mrf.mxu0
  %v465 = vadd.f32 %v232, %v464
  %466 = vmatmul.f32.gmra.mxu0 %v307
  %v467 = vpop.f32.mrf.mxu0
  %v468 = vadd.f32 %v232, %v467
  %469 = vmatmul.f32.gmra.mxu0 %v310
  %v470 = vpop.f32.mrf.mxu0
  %v471 = vadd.f32 %v232, %v470
  %472 = vmatmul.f32.gmra.mxu0 %v313
  %v473 = vpop.f32.mrf.mxu0
  %v474 = vadd.f32 %v232, %v473
  %475 = vmatmul.f32.gmra.mxu0 %v316
  %v476 = vpop.f32.mrf.mxu0
  %v477 = vadd.f32 %v232, %v476
  %478 = vmatmul.f32.gmra.mxu0 %v319
  %v479 = vpop.f32.mrf.mxu0
  %v480 = vadd.f32 %v232, %v479
  %481 = vmatmul.f32.gmra.mxu0 %v322
  %v482 = vpop.f32.mrf.mxu0
  %v483 = vadd.f32 %v232, %v482
  %484 = vmatmul.f32.gmra.mxu0 %v325
  %v485 = vpop.f32.mrf.mxu0
  %v486 = vadd.f32 %v232, %v485
  %487 = vmatmul.f32.gmra.mxu0 %v328
  %v488 = vpop.f32.mrf.mxu0
  %v489 = vadd.f32 %v232, %v488
  %490 = vmatmul.f32.gmra.mxu0 %v331
  %v491 = vpop.f32.mrf.mxu0
  %v492 = vadd.f32 %v232, %v491
  %493 = vmatmul.f32.gmra.mxu0 %v334
  %v494 = vpop.f32.mrf.mxu0
  %v495 = vadd.f32 %v232, %v494
  %496 = vmatmul.f32.gmra.mxu0 %v337
  %v497 = vpop.f32.mrf.mxu0
  %v498 = vadd.f32 %v232, %v497
  %499 = vmatmul.f32.gmra.mxu0 %v340
  %v500 = vpop.f32.mrf.mxu0
  %v501 = vadd.f32 %v232, %v500
  %502 = vmatmul.f32.gmra.mxu0 %v343
  %v503 = vpop.f32.mrf.mxu0
  %v504 = vadd.f32 %v232, %v503
  %505 = vmatmul.f32.gmra.mxu0 %v346
  %v506 = vpop.f32.mrf.mxu0
  %v507 = vadd.f32 %v232, %v506
  %508 = vmatmul.f32.gmra.mxu0 %v349
  %v509 = vpop.f32.mrf.mxu0
  %v510 = vadd.f32 %v232, %v509
  %511 = vmatmul.f32.gmra.mxu0 %v352
  %v512 = vpop.f32.mrf.mxu0
  %v513 = vadd.f32 %v232, %v512
  %514 = vmatmul.f32.gmra.mxu0 %v355
  %v515 = vpop.f32.mrf.mxu0
  %v516 = vadd.f32 %v232, %v515
  %517 = vmatmul.f32.gmra.mxu0 %v358
  %v518 = vpop.f32.mrf.mxu0
  %v519 = vadd.f32 %v232, %v518
  %520 = vmatmul.f32.gmra.mxu0 %v361
  %v521 = vpop.f32.mrf.mxu0
  %v522 = vadd.f32 %v232, %v521
  %523 = vmatmul.f32.gmra.mxu0 %v364
  %v524 = vpop.f32.mrf.mxu0
  %v525 = vadd.f32 %v232, %v524
  %526 = vmatmul.f32.gmra.mxu0 %v367
  %v527 = vpop.f32.mrf.mxu0
  %v528 = vadd.f32 %v232, %v527
  %529 = vmatmul.f32.gmra.mxu0 %v370
  %v530 = vpop.f32.mrf.mxu0
  %v531 = vadd.f32 %v232, %v530
  %532 = vmatmul.f32.gmra.mxu0 %v373
  %v533 = vpop.f32.mrf.mxu0
  %v534 = vadd.f32 %v232, %v533
  %535 = vmatmul.f32.gmra.mxu0 %v376
  %v536 = vpop.f32.mrf.mxu0
  %v537 = vadd.f32 %v232, %v536
  %538 = vdwg.mxu0
  %539 = vst [vmem:[%s13] sm:$0xff] %v396
  %540 = vst [vmem:[%s13 + $0x8] sm:$0xff] %v399
  %541 = vst [vmem:[%s13 + $0x10] sm:$0xff] %v402
  %542 = vst [vmem:[%s13 + $0x18] sm:$0xff] %v405
  %543 = vst [vmem:[%s13 + $0x20] sm:$0xff] %v408
  %544 = vst [vmem:[%s13 + $0x28] sm:$0xff] %v411
  %545 = vst [vmem:[%s13 + $0x30] sm:$0xff] %v414
  %546 = vst [vmem:[%s13 + $0x38] sm:$0xff] %v417
  %547 = vst [vmem:[%s13 + $0x40] sm:$0xff] %v420
  %548 = vst [vmem:[%s13 + $0x48] sm:$0xff] %v423
  %549 = vst [vmem:[%s13 + $0x50] sm:$0xff] %v426
  %550 = vst [vmem:[%s13 + $0x58] sm:$0xff] %v429
  %551 = vst [vmem:[%s13 + $0x60] sm:$0xff] %v432
  %552 = vst [vmem:[%s13 + $0x68] sm:$0xff] %v435
  %553 = vst [vmem:[%s13 + $0x70] sm:$0xff] %v438
  %554 = vst [vmem:[%s13 + $0x78] sm:$0xff] %v441
  %555 = vst [vmem:[%s13 + $0x80] sm:$0xff] %v444
  %556 = vst [vmem:[%s13 + $0x88] sm:$0xff] %v447
  %557 = vst [vmem:[%s13 + $0x90] sm:$0xff] %v450
  %558 = vst [vmem:[%s13 + $0x98] sm:$0xff] %v453
  %559 = vst [vmem:[%s13 + $0xa0] sm:$0xff] %v456
  %560 = vst [vmem:[%s13 + $0xa8] sm:$0xff] %v459
  %561 = vst [vmem:[%s13 + $0xb0] sm:$0xff] %v462
  %562 = vst [vmem:[%s13 + $0xb8] sm:$0xff] %v465
  %563 = vst [vmem:[%s13 + $0xc0] sm:$0xff] %v468
  %564 = vst [vmem:[%s13 + $0xc8] sm:$0xff] %v471
  %565 = vst [vmem:[%s13 + $0xd0] sm:$0xff] %v474
  %566 = vst [vmem:[%s13 + $0xd8] sm:$0xff] %v477
  %567 = vst [vmem:[%s13 + $0xe0] sm:$0xff] %v480
  %568 = vst [vmem:[%s13 + $0xe8] sm:$0xff] %v483
  %569 = vst [vmem:[%s13 + $0xf0] sm:$0xff] %v486
  %570 = vst [vmem:[%s13 + $0xf8] sm:$0xff] %v489
  %571 = vst [vmem:[%s13 + $0x100] sm:$0xff] %v492
  %572 = vst [vmem:[%s13 + $0x108] sm:$0xff] %v495
  %573 = vst [vmem:[%s13 + $0x110] sm:$0xff] %v498
  %574 = vst [vmem:[%s13 + $0x118] sm:$0xff] %v501
  %575 = vst [vmem:[%s13 + $0x120] sm:$0xff] %v504
  %576 = vst [vmem:[%s13 + $0x128] sm:$0xff] %v507
  %577 = vst [vmem:[%s13 + $0x130] sm:$0xff] %v510
  %578 = vst [vmem:[%s13 + $0x138] sm:$0xff] %v513
  %579 = vst [vmem:[%s13 + $0x140] sm:$0xff] %v516
  %580 = vst [vmem:[%s13 + $0x148] sm:$0xff] %v519
  %581 = vst [vmem:[%s13 + $0x150] sm:$0xff] %v522
  %582 = vst [vmem:[%s13 + $0x158] sm:$0xff] %v525
  %583 = vst [vmem:[%s13 + $0x160] sm:$0xff] %v528
  %584 = vst [vmem:[%s13 + $0x168] sm:$0xff] %v531
  %585 = vst [vmem:[%s13 + $0x170] sm:$0xff] %v534
  %586 = vst [vmem:[%s13 + $0x178] sm:$0xff] %v537
  %v587 = vld [vmem:[%s2] sm:$0xff]
  %v588 = vld [vmem:[%s2 + $0x8] sm:$0xff]
  %v589 = vld [vmem:[%s2 + $0x10] sm:$0xff]
  %v590 = vld [vmem:[%s2 + $0x18] sm:$0xff]
  %v591 = vld [vmem:[%s2 + $0x20] sm:$0xff]
  %v592 = vld [vmem:[%s2 + $0x28] sm:$0xff]
  %v593 = vld [vmem:[%s2 + $0x30] sm:$0xff]
  %v594 = vld [vmem:[%s2 + $0x38] sm:$0xff]
  %v595 = vld [vmem:[%s2 + $0x40] sm:$0xff]
  %v596 = vld [vmem:[%s2 + $0x48] sm:$0xff]
  %v597 = vld [vmem:[%s2 + $0x50] sm:$0xff]
  %v598 = vld [vmem:[%s2 + $0x58] sm:$0xff]
  %v599 = vld [vmem:[%s2 + $0x60] sm:$0xff]
  %v600 = vld [vmem:[%s2 + $0x68] sm:$0xff]
  %v601 = vld [vmem:[%s2 + $0x70] sm:$0xff]
  %v602 = vld [vmem:[%s2 + $0x78] sm:$0xff]
  %603 = vmatpush.msra.mxu0 %v181
  %604 = vmatpush.msra.mxu0 %v178
  %605 = vmatpush.msra.mxu0 %v175
  %606 = vmatpush.msra.mxu0 %v172
  %607 = vmatpush.msra.mxu0 %v169
  %608 = vmatpush.msra.mxu0 %v166
  %609 = vmatpush.msra.mxu0 %v163
  %610 = vmatpush.msra.mxu0 %v160
  %611 = vmatpush.msra.mxu0 %v157
  %612 = vmatpush.msra.mxu0 %v154
  %613 = vmatpush.msra.mxu0 %v151
  %614 = vmatpush.msra.mxu0 %v148
  %615 = vmatpush.msra.mxu0 %v145
  %616 = vmatpush.msra.mxu0 %v142
  %617 = vmatpush.msra.mxu0 %v139
  %618 = vmatpush.msra.mxu0 %v136
  %619 = vmatmul.f32.gmra.mxu0 %v587
  %v620 = vpop.f32.mrf.mxu0
  %v621 = vadd.f32 0.0, %v620
  %622 = vmatmul.f32.gmra.mxu0 %v588
  %v623 = vpop.f32.mrf.mxu0
  %v624 = vadd.f32 0.0, %v623
  %625 = vmatmul.f32.gmra.mxu0 %v589
  %v626 = vpop.f32.mrf.mxu0
  %v627 = vadd.f32 0.0, %v626
  %628 = vmatmul.f32.gmra.mxu0 %v590
  %v629 = vpop.f32.mrf.mxu0
  %v630 = vadd.f32 0.0, %v629
  %631 = vmatmul.f32.gmra.mxu0 %v591
  %v632 = vpop.f32.mrf.mxu0
  %v633 = vadd.f32 0.0, %v632
  %634 = vmatmul.f32.gmra.mxu0 %v592
  %v635 = vpop.f32.mrf.mxu0
  %v636 = vadd.f32 0.0, %v635
  %637 = vmatmul.f32.gmra.mxu0 %v593
  %v638 = vpop.f32.mrf.mxu0
  %v639 = vadd.f32 0.0, %v638
  %640 = vmatmul.f32.gmra.mxu0 %v594
  %v641 = vpop.f32.mrf.mxu0
  %v642 = vadd.f32 0.0, %v641
  %643 = vmatmul.f32.gmra.mxu0 %v595
  %v644 = vpop.f32.mrf.mxu0
  %v645 = vadd.f32 0.0, %v644
  %646 = vmatmul.f32.gmra.mxu0 %v596
  %v647 = vpop.f32.mrf.mxu0
  %v648 = vadd.f32 0.0, %v647
  %649 = vmatmul.f32.gmra.mxu0 %v597
  %v650 = vpop.f32.mrf.mxu0
  %v651 = vadd.f32 0.0, %v650
  %652 = vmatmul.f32.gmra.mxu0 %v598
  %v653 = vpop.f32.mrf.mxu0
  %v654 = vadd.f32 0.0, %v653
  %655 = vmatmul.f32.gmra.mxu0 %v599
  %v656 = vpop.f32.mrf.mxu0
  %v657 = vadd.f32 0.0, %v656
  %658 = vmatmul.f32.gmra.mxu0 %v600
  %v659 = vpop.f32.mrf.mxu0
  %v660 = vadd.f32 0.0, %v659
  %661 = vmatmul.f32.gmra.mxu0 %v601
  %v662 = vpop.f32.mrf.mxu0
  %v663 = vadd.f32 0.0, %v662
  %664 = vmatmul.f32.gmra.mxu0 %v602
  %v665 = vpop.f32.mrf.mxu0
  %v666 = vadd.f32 0.0, %v665
  %667 = vdwg.mxu0
  %v668 = vld [vmem:[%s3] sm:$0xff]
  %v669 = vld [vmem:[%s3 + $0x8] sm:$0xff]
  %v670 = vld [vmem:[%s3 + $0x10] sm:$0xff]
  %v671 = vld [vmem:[%s3 + $0x18] sm:$0xff]
  %v672 = vld [vmem:[%s3 + $0x20] sm:$0xff]
  %v673 = vld [vmem:[%s3 + $0x28] sm:$0xff]
  %v674 = vld [vmem:[%s3 + $0x30] sm:$0xff]
  %v675 = vld [vmem:[%s3 + $0x38] sm:$0xff]
  %v676 = vld [vmem:[%s3 + $0x40] sm:$0xff]
  %v677 = vld [vmem:[%s3 + $0x48] sm:$0xff]
  %v678 = vld [vmem:[%s3 + $0x50] sm:$0xff]
  %v679 = vld [vmem:[%s3 + $0x58] sm:$0xff]
  %v680 = vld [vmem:[%s3 + $0x60] sm:$0xff]
  %v681 = vld [vmem:[%s3 + $0x68] sm:$0xff]
  %v682 = vld [vmem:[%s3 + $0x70] sm:$0xff]
  %v683 = vld [vmem:[%s3 + $0x78] sm:$0xff]
  %v684 = vld [vmem:[%s4] sm:$0xff]
  %v685 = vld [vmem:[%s7] sm:$0xff]
  %v686 = vld [vmem:[%s7 + $0x8] sm:$0xff]
  %v687 = vld [vmem:[%s7 + $0x10] sm:$0xff]
  %v688 = vld [vmem:[%s7 + $0x18] sm:$0xff]
  %v689 = vld [vmem:[%s7 + $0x20] sm:$0xff]
  %v690 = vld [vmem:[%s7 + $0x28] sm:$0xff]
  %v691 = vld [vmem:[%s7 + $0x30] sm:$0xff]
  %v692 = vld [vmem:[%s7 + $0x38] sm:$0xff]
  %v693 = vld [vmem:[%s7 + $0x40] sm:$0xff]
  %v694 = vld [vmem:[%s7 + $0x48] sm:$0xff]
  %v695 = vld [vmem:[%s7 + $0x50] sm:$0xff]
  %v696 = vld [vmem:[%s7 + $0x58] sm:$0xff]
  %v697 = vld [vmem:[%s7 + $0x60] sm:$0xff]
  %v698 = vld [vmem:[%s7 + $0x68] sm:$0xff]
  %v699 = vld [vmem:[%s7 + $0x70] sm:$0xff]
  %v700 = vld [vmem:[%s7 + $0x78] sm:$0xff]
  %701 = vmatpush.msra.mxu0 %v181
  %702 = vmatpush.msra.mxu0 %v178
  %703 = vmatpush.msra.mxu0 %v175
  %704 = vmatpush.msra.mxu0 %v172
  %705 = vmatpush.msra.mxu0 %v169
  %706 = vmatpush.msra.mxu0 %v166
  %707 = vmatpush.msra.mxu0 %v163
  %708 = vmatpush.msra.mxu0 %v160
  %709 = vmatpush.msra.mxu0 %v157
  %710 = vmatpush.msra.mxu0 %v154
  %711 = vmatpush.msra.mxu0 %v151
  %712 = vmatpush.msra.mxu0 %v148
  %713 = vmatpush.msra.mxu0 %v145
  %714 = vmatpush.msra.mxu0 %v142
  %715 = vmatpush.msra.mxu0 %v139
  %716 = vmatpush.msra.mxu0 %v136
  %717 = vmatmul.f32.gmra.mxu0 %v684
  %v718 = vpop.f32.mrf.mxu0
  %v719 = vadd.f32 0.0, %v718
  %720 = vdwg.mxu0
  %v721 = vld [vmem:[%s8] sm:$0xff]
  %v722 = vld [vmem:[%s8 + $0x8] sm:$0xff]
  %v723 = vld [vmem:[%s8 + $0x10] sm:$0xff]
  %v724 = vld [vmem:[%s8 + $0x18] sm:$0xff]
  %v725 = vld [vmem:[%s8 + $0x20] sm:$0xff]
  %v726 = vld [vmem:[%s8 + $0x28] sm:$0xff]
  %v727 = vld [vmem:[%s8 + $0x30] sm:$0xff]
  %v728 = vld [vmem:[%s8 + $0x38] sm:$0xff]
  %v729 = vld [vmem:[%s8 + $0x40] sm:$0xff]
  %v730 = vld [vmem:[%s8 + $0x48] sm:$0xff]
  %v731 = vld [vmem:[%s8 + $0x50] sm:$0xff]
  %v732 = vld [vmem:[%s8 + $0x58] sm:$0xff]
  %v733 = vld [vmem:[%s8 + $0x60] sm:$0xff]
  %v734 = vld [vmem:[%s8 + $0x68] sm:$0xff]
  %v735 = vld [vmem:[%s8 + $0x70] sm:$0xff]
  %v736 = vld [vmem:[%s8 + $0x78] sm:$0xff]
  %737 = vmatpush.msra.mxu0 %v666
  %738 = vmatpush.msra.mxu0 %v663
  %739 = vmatpush.msra.mxu0 %v660
  %740 = vmatpush.msra.mxu0 %v657
  %741 = vmatpush.msra.mxu0 %v654
  %742 = vmatpush.msra.mxu0 %v651
  %743 = vmatpush.msra.mxu0 %v648
  %744 = vmatpush.msra.mxu0 %v645
  %745 = vmatpush.msra.mxu0 %v642
  %746 = vmatpush.msra.mxu0 %v639
  %747 = vmatpush.msra.mxu0 %v636
  %748 = vmatpush.msra.mxu0 %v633
  %749 = vmatpush.msra.mxu0 %v630
  %750 = vmatpush.msra.mxu0 %v627
  %751 = vmatpush.msra.mxu0 %v624
  %752 = vmatpush.msra.mxu0 %v621
  %753 = vmatmul.f32.gmra.mxu0 %v668
  %v754 = vpop.f32.mrf.mxu0
  %v755 = vadd.f32 0.0, %v754
  %756 = vmatmul.f32.gmra.mxu0 %v669
  %v757 = vpop.f32.mrf.mxu0
  %v758 = vadd.f32 0.0, %v757
  %759 = vmatmul.f32.gmra.mxu0 %v670
  %v760 = vpop.f32.mrf.mxu0
  %v761 = vadd.f32 0.0, %v760
  %762 = vmatmul.f32.gmra.mxu0 %v671
  %v763 = vpop.f32.mrf.mxu0
  %v764 = vadd.f32 0.0, %v763
  %765 = vmatmul.f32.gmra.mxu0 %v672
  %v766 = vpop.f32.mrf.mxu0
  %v767 = vadd.f32 0.0, %v766
  %768 = vmatmul.f32.gmra.mxu0 %v673
  %v769 = vpop.f32.mrf.mxu0
  %v770 = vadd.f32 0.0, %v769
  %771 = vmatmul.f32.gmra.mxu0 %v674
  %v772 = vpop.f32.mrf.mxu0
  %v773 = vadd.f32 0.0, %v772
  %774 = vmatmul.f32.gmra.mxu0 %v675
  %v775 = vpop.f32.mrf.mxu0
  %v776 = vadd.f32 0.0, %v775
  %777 = vmatmul.f32.gmra.mxu0 %v676
  %v778 = vpop.f32.mrf.mxu0
  %v779 = vadd.f32 0.0, %v778
  %780 = vmatmul.f32.gmra.mxu0 %v677
  %v781 = vpop.f32.mrf.mxu0
  %v782 = vadd.f32 0.0, %v781
  %783 = vmatmul.f32.gmra.mxu0 %v678
  %v784 = vpop.f32.mrf.mxu0
  %v785 = vadd.f32 0.0, %v784
  %786 = vmatmul.f32.gmra.mxu0 %v679
  %v787 = vpop.f32.mrf.mxu0
  %v788 = vadd.f32 0.0, %v787
  %789 = vmatmul.f32.gmra.mxu0 %v680
  %v790 = vpop.f32.mrf.mxu0
  %v791 = vadd.f32 0.0, %v790
  %792 = vmatmul.f32.gmra.mxu0 %v681
  %v793 = vpop.f32.mrf.mxu0
  %v794 = vadd.f32 0.0, %v793
  %795 = vmatmul.f32.gmra.mxu0 %v682
  %v796 = vpop.f32.mrf.mxu0
  %v797 = vadd.f32 0.0, %v796
  %798 = vmatmul.f32.gmra.mxu0 %v683
  %v799 = vpop.f32.mrf.mxu0
  %v800 = vadd.f32 0.0, %v799
  %801 = vdwg.mxu0
  %v802 = vperm.slane %v43, 0
  %803 = vmatpush.msra.mxu0 %v700
  %804 = vmatpush.msra.mxu0 %v699
  %805 = vmatpush.msra.mxu0 %v698
  %806 = vmatpush.msra.mxu0 %v697
  %807 = vmatpush.msra.mxu0 %v696
  %808 = vmatpush.msra.mxu0 %v695
  %809 = vmatpush.msra.mxu0 %v694
  %810 = vmatpush.msra.mxu0 %v693
  %811 = vmatpush.msra.mxu0 %v692
  %812 = vmatpush.msra.mxu0 %v691
  %813 = vmatpush.msra.mxu0 %v690
  %814 = vmatpush.msra.mxu0 %v689
  %815 = vmatpush.msra.mxu0 %v688
  %816 = vmatpush.msra.mxu0 %v687
  %817 = vmatpush.msra.mxu0 %v686
  %818 = vmatpush.msra.mxu0 %v685
  %819 = vmatmul.f32.gmra.mxu0 %v755
  %v820 = vpop.f32.mrf.mxu0
  %v821 = vadd.f32 %v802, %v820
  %822 = vmatmul.f32.gmra.mxu0 %v758
  %v823 = vpop.f32.mrf.mxu0
  %v824 = vadd.f32 %v802, %v823
  %825 = vmatmul.f32.gmra.mxu0 %v761
  %v826 = vpop.f32.mrf.mxu0
  %v827 = vadd.f32 %v802, %v826
  %828 = vmatmul.f32.gmra.mxu0 %v764
  %v829 = vpop.f32.mrf.mxu0
  %v830 = vadd.f32 %v802, %v829
  %831 = vmatmul.f32.gmra.mxu0 %v767
  %v832 = vpop.f32.mrf.mxu0
  %v833 = vadd.f32 %v802, %v832
  %834 = vmatmul.f32.gmra.mxu0 %v770
  %v835 = vpop.f32.mrf.mxu0
  %v836 = vadd.f32 %v802, %v835
  %837 = vmatmul.f32.gmra.mxu0 %v773
  %v838 = vpop.f32.mrf.mxu0
  %v839 = vadd.f32 %v802, %v838
  %840 = vmatmul.f32.gmra.mxu0 %v776
  %v841 = vpop.f32.mrf.mxu0
  %v842 = vadd.f32 %v802, %v841
  %843 = vmatmul.f32.gmra.mxu0 %v779
  %v844 = vpop.f32.mrf.mxu0
  %v845 = vadd.f32 %v802, %v844
  %846 = vmatmul.f32.gmra.mxu0 %v782
  %v847 = vpop.f32.mrf.mxu0
  %v848 = vadd.f32 %v802, %v847
  %849 = vmatmul.f32.gmra.mxu0 %v785
  %v850 = vpop.f32.mrf.mxu0
  %v851 = vadd.f32 %v802, %v850
  %852 = vmatmul.f32.gmra.mxu0 %v788
  %v853 = vpop.f32.mrf.mxu0
  %v854 = vadd.f32 %v802, %v853
  %855 = vmatmul.f32.gmra.mxu0 %v791
  %v856 = vpop.f32.mrf.mxu0
  %v857 = vadd.f32 %v802, %v856
  %858 = vmatmul.f32.gmra.mxu0 %v794
  %v859 = vpop.f32.mrf.mxu0
  %v860 = vadd.f32 %v802, %v859
  %861 = vmatmul.f32.gmra.mxu0 %v797
  %v862 = vpop.f32.mrf.mxu0
  %v863 = vadd.f32 %v802, %v862
  %864 = vmatmul.f32.gmra.mxu0 %v800
  %v865 = vpop.f32.mrf.mxu0
  %v866 = vadd.f32 %v802, %v865
  %867 = vdwg.mxu0
  %vm868 = vcmp.gt.f32.partialorder %v821, 0.0
  %vm869 = vcmp.gt.f32.partialorder %v824, 0.0
  %vm870 = vcmp.gt.f32.partialorder %v827, 0.0
  %vm871 = vcmp.gt.f32.partialorder %v830, 0.0
  %vm872 = vcmp.gt.f32.partialorder %v833, 0.0
  %vm873 = vcmp.gt.f32.partialorder %v836, 0.0
  %vm874 = vcmp.gt.f32.partialorder %v839, 0.0
  %vm875 = vcmp.gt.f32.partialorder %v842, 0.0
  %vm876 = vcmp.gt.f32.partialorder %v845, 0.0
  %vm877 = vcmp.gt.f32.partialorder %v848, 0.0
  %vm878 = vcmp.gt.f32.partialorder %v851, 0.0
  %vm879 = vcmp.gt.f32.partialorder %v854, 0.0
  %vm880 = vcmp.gt.f32.partialorder %v857, 0.0
  %vm881 = vcmp.gt.f32.partialorder %v860, 0.0
  %vm882 = vcmp.gt.f32.partialorder %v863, 0.0
  %vm883 = vcmp.gt.f32.partialorder %v866, 0.0
  %v884 = vmul.f32 %v821, 0.01
  %v885 = vmul.f32 %v824, 0.01
  %v886 = vmul.f32 %v827, 0.01
  %v887 = vmul.f32 %v830, 0.01
  %v888 = vmul.f32 %v833, 0.01
  %v889 = vmul.f32 %v836, 0.01
  %v890 = vmul.f32 %v839, 0.01
  %v891 = vmul.f32 %v842, 0.01
  %v892 = vmul.f32 %v845, 0.01
  %v893 = vmul.f32 %v848, 0.01
  %v894 = vmul.f32 %v851, 0.01
  %v895 = vmul.f32 %v854, 0.01
  %v896 = vmul.f32 %v857, 0.01
  %v897 = vmul.f32 %v860, 0.01
  %v898 = vmul.f32 %v863, 0.01
  %v899 = vmul.f32 %v866, 0.01
  %v900 = vsel %vm868, %v821, %v884
  %v901 = vsel %vm869, %v824, %v885
  %v902 = vsel %vm870, %v827, %v886
  %v903 = vsel %vm871, %v830, %v887
  %v904 = vsel %vm872, %v833, %v888
  %v905 = vsel %vm873, %v836, %v889
  %v906 = vsel %vm874, %v839, %v890
  %v907 = vsel %vm875, %v842, %v891
  %v908 = vsel %vm876, %v845, %v892
  %v909 = vsel %vm877, %v848, %v893
  %v910 = vsel %vm878, %v851, %v894
  %v911 = vsel %vm879, %v854, %v895
  %v912 = vsel %vm880, %v857, %v896
  %v913 = vsel %vm881, %v860, %v897
  %v914 = vsel %vm882, %v863, %v898
  %v915 = vsel %vm883, %v866, %v899
  %916 = vmatpush.msra.mxu0 %v915
  %917 = vmatpush.msra.mxu0 %v914
  %918 = vmatpush.msra.mxu0 %v913
  %919 = vmatpush.msra.mxu0 %v912
  %920 = vmatpush.msra.mxu0 %v911
  %921 = vmatpush.msra.mxu0 %v910
  %922 = vmatpush.msra.mxu0 %v909
  %923 = vmatpush.msra.mxu0 %v908
  %924 = vmatpush.msra.mxu0 %v907
  %925 = vmatpush.msra.mxu0 %v906
  %926 = vmatpush.msra.mxu0 %v905
  %927 = vmatpush.msra.mxu0 %v904
  %928 = vmatpush.msra.mxu0 %v903
  %929 = vmatpush.msra.mxu0 %v902
  %930 = vmatpush.msra.mxu0 %v901
  %931 = vmatpush.msra.mxu0 %v900
  %932 = vmatmul.f32.gmra.mxu0 %v684
  %v933 = vpop.f32.mrf.mxu0
  %v934 = vadd.f32 0.0, %v933
  %935 = vdwg.mxu0
  %v936 = vld [vmem:[%s8 + $0x80] sm:$0xff]
  %v937 = vld [vmem:[%s8 + $0x88] sm:$0xff]
  %v938 = vld [vmem:[%s8 + $0x90] sm:$0xff]
  %v939 = vld [vmem:[%s8 + $0x98] sm:$0xff]
  %v940 = vld [vmem:[%s8 + $0xa0] sm:$0xff]
  %v941 = vld [vmem:[%s8 + $0xa8] sm:$0xff]
  %v942 = vld [vmem:[%s8 + $0xb0] sm:$0xff]
  %v943 = vld [vmem:[%s8 + $0xb8] sm:$0xff]
  %v944 = vld [vmem:[%s8 + $0xc0] sm:$0xff]
  %v945 = vld [vmem:[%s8 + $0xc8] sm:$0xff]
  %v946 = vld [vmem:[%s8 + $0xd0] sm:$0xff]
  %v947 = vld [vmem:[%s8 + $0xd8] sm:$0xff]
  %v948 = vld [vmem:[%s8 + $0xe0] sm:$0xff]
  %v949 = vld [vmem:[%s8 + $0xe8] sm:$0xff]
  %v950 = vld [vmem:[%s8 + $0xf0] sm:$0xff]
  %v951 = vld [vmem:[%s8 + $0xf8] sm:$0xff]
  %952 = vmatpush.msra.mxu0 %v951
  %953 = vmatpush.msra.mxu0 %v950
  %954 = vmatpush.msra.mxu0 %v949
  %955 = vmatpush.msra.mxu0 %v948
  %956 = vmatpush.msra.mxu0 %v947
  %957 = vmatpush.msra.mxu0 %v946
  %958 = vmatpush.msra.mxu0 %v945
  %959 = vmatpush.msra.mxu0 %v944
  %960 = vmatpush.msra.mxu0 %v943
  %961 = vmatpush.msra.mxu0 %v942
  %962 = vmatpush.msra.mxu0 %v941
  %963 = vmatpush.msra.mxu0 %v940
  %964 = vmatpush.msra.mxu0 %v939
  %965 = vmatpush.msra.mxu0 %v938
  %966 = vmatpush.msra.mxu0 %v937
  %967 = vmatpush.msra.mxu0 %v936
  %968 = vmatmul.f32.gmra.mxu0 %v934
  %v969 = vpop.f32.mrf.mxu0
  %v970 = vadd.f32 0.0, %v969
  %971 = vdwg.mxu0
  %972 = vmatpush.msra.mxu0 %v736
  %973 = vmatpush.msra.mxu0 %v735
  %974 = vmatpush.msra.mxu0 %v734
  %975 = vmatpush.msra.mxu0 %v733
  %976 = vmatpush.msra.mxu0 %v732
  %977 = vmatpush.msra.mxu0 %v731
  %978 = vmatpush.msra.mxu0 %v730
  %979 = vmatpush.msra.mxu0 %v729
  %980 = vmatpush.msra.mxu0 %v728
  %981 = vmatpush.msra.mxu0 %v727
  %982 = vmatpush.msra.mxu0 %v726
  %983 = vmatpush.msra.mxu0 %v725
  %984 = vmatpush.msra.mxu0 %v724
  %985 = vmatpush.msra.mxu0 %v723
  %986 = vmatpush.msra.mxu0 %v722
  %987 = vmatpush.msra.mxu0 %v721
  %988 = vmatmul.f32.gmra.mxu0 %v719
  %v989 = vpop.f32.mrf.mxu0
  %v990 = vadd.f32 %v970, %v989
  %991 = vdwg.mxu0
  %992 = vmatpush.msra.mxu0 %v915
  %993 = vmatpush.msra.mxu0 %v914
  %994 = vmatpush.msra.mxu0 %v913
  %995 = vmatpush.msra.mxu0 %v912
  %996 = vmatpush.msra.mxu0 %v911
  %997 = vmatpush.msra.mxu0 %v910
  %998 = vmatpush.msra.mxu0 %v909
  %999 = vmatpush.msra.mxu0 %v908
  %1000 = vmatpush.msra.mxu0 %v907
  %1001 = vmatpush.msra.mxu0 %v906
  %1002 = vmatpush.msra.mxu0 %v905
  %1003 = vmatpush.msra.mxu0 %v904
  %1004 = vmatpush.msra.mxu0 %v903
  %1005 = vmatpush.msra.mxu0 %v902
  %1006 = vmatpush.msra.mxu0 %v901
  %1007 = vmatpush.msra.mxu0 %v900
  %1008 = vmatmul.f32.gmra.mxu0 %v668
  %v1009 = vpop.f32.mrf.mxu0
  %v1010 = vadd.f32 0.0, %v1009
  %1011 = vmatmul.f32.gmra.mxu0 %v669
  %v1012 = vpop.f32.mrf.mxu0
  %v1013 = vadd.f32 0.0, %v1012
  %1014 = vmatmul.f32.gmra.mxu0 %v670
  %v1015 = vpop.f32.mrf.mxu0
  %v1016 = vadd.f32 0.0, %v1015
  %1017 = vmatmul.f32.gmra.mxu0 %v671
  %v1018 = vpop.f32.mrf.mxu0
  %v1019 = vadd.f32 0.0, %v1018
  %1020 = vmatmul.f32.gmra.mxu0 %v672
  %v1021 = vpop.f32.mrf.mxu0
  %v1022 = vadd.f32 0.0, %v1021
  %1023 = vmatmul.f32.gmra.mxu0 %v673
  %v1024 = vpop.f32.mrf.mxu0
  %v1025 = vadd.f32 0.0, %v1024
  %1026 = vmatmul.f32.gmra.mxu0 %v674
  %v1027 = vpop.f32.mrf.mxu0
  %v1028 = vadd.f32 0.0, %v1027
  %1029 = vmatmul.f32.gmra.mxu0 %v675
  %v1030 = vpop.f32.mrf.mxu0
  %v1031 = vadd.f32 0.0, %v1030
  %1032 = vmatmul.f32.gmra.mxu0 %v676
  %v1033 = vpop.f32.mrf.mxu0
  %v1034 = vadd.f32 0.0, %v1033
  %1035 = vmatmul.f32.gmra.mxu0 %v677
  %v1036 = vpop.f32.mrf.mxu0
  %v1037 = vadd.f32 0.0, %v1036
  %1038 = vmatmul.f32.gmra.mxu0 %v678
  %v1039 = vpop.f32.mrf.mxu0
  %v1040 = vadd.f32 0.0, %v1039
  %1041 = vmatmul.f32.gmra.mxu0 %v679
  %v1042 = vpop.f32.mrf.mxu0
  %v1043 = vadd.f32 0.0, %v1042
  %1044 = vmatmul.f32.gmra.mxu0 %v680
  %v1045 = vpop.f32.mrf.mxu0
  %v1046 = vadd.f32 0.0, %v1045
  %1047 = vmatmul.f32.gmra.mxu0 %v681
  %v1048 = vpop.f32.mrf.mxu0
  %v1049 = vadd.f32 0.0, %v1048
  %1050 = vmatmul.f32.gmra.mxu0 %v682
  %v1051 = vpop.f32.mrf.mxu0
  %v1052 = vadd.f32 0.0, %v1051
  %1053 = vmatmul.f32.gmra.mxu0 %v683
  %v1054 = vpop.f32.mrf.mxu0
  %v1055 = vadd.f32 0.0, %v1054
  %1056 = vdwg.mxu0
  %1057 = vmatpush.msra.mxu0 %v700
  %1058 = vmatpush.msra.mxu0 %v699
  %1059 = vmatpush.msra.mxu0 %v698
  %1060 = vmatpush.msra.mxu0 %v697
  %1061 = vmatpush.msra.mxu0 %v696
  %1062 = vmatpush.msra.mxu0 %v695
  %1063 = vmatpush.msra.mxu0 %v694
  %1064 = vmatpush.msra.mxu0 %v693
  %1065 = vmatpush.msra.mxu0 %v692
  %1066 = vmatpush.msra.mxu0 %v691
  %1067 = vmatpush.msra.mxu0 %v690
  %1068 = vmatpush.msra.mxu0 %v689
  %1069 = vmatpush.msra.mxu0 %v688
  %1070 = vmatpush.msra.mxu0 %v687
  %1071 = vmatpush.msra.mxu0 %v686
  %1072 = vmatpush.msra.mxu0 %v685
  %1073 = vmatmul.f32.gmra.mxu0 %v1010
  %v1074 = vpop.f32.mrf.mxu0
  %v1075 = vadd.f32 %v802, %v1074
  %1076 = vmatmul.f32.gmra.mxu0 %v1013
  %v1077 = vpop.f32.mrf.mxu0
  %v1078 = vadd.f32 %v802, %v1077
  %1079 = vmatmul.f32.gmra.mxu0 %v1016
  %v1080 = vpop.f32.mrf.mxu0
  %v1081 = vadd.f32 %v802, %v1080
  %1082 = vmatmul.f32.gmra.mxu0 %v1019
  %v1083 = vpop.f32.mrf.mxu0
  %v1084 = vadd.f32 %v802, %v1083
  %1085 = vmatmul.f32.gmra.mxu0 %v1022
  %v1086 = vpop.f32.mrf.mxu0
  %v1087 = vadd.f32 %v802, %v1086
  %1088 = vmatmul.f32.gmra.mxu0 %v1025
  %v1089 = vpop.f32.mrf.mxu0
  %v1090 = vadd.f32 %v802, %v1089
  %1091 = vmatmul.f32.gmra.mxu0 %v1028
  %v1092 = vpop.f32.mrf.mxu0
  %v1093 = vadd.f32 %v802, %v1092
  %1094 = vmatmul.f32.gmra.mxu0 %v1031
  %v1095 = vpop.f32.mrf.mxu0
  %v1096 = vadd.f32 %v802, %v1095
  %1097 = vmatmul.f32.gmra.mxu0 %v1034
  %v1098 = vpop.f32.mrf.mxu0
  %v1099 = vadd.f32 %v802, %v1098
  %1100 = vmatmul.f32.gmra.mxu0 %v1037
  %v1101 = vpop.f32.mrf.mxu0
  %v1102 = vadd.f32 %v802, %v1101
  %1103 = vmatmul.f32.gmra.mxu0 %v1040
  %v1104 = vpop.f32.mrf.mxu0
  %v1105 = vadd.f32 %v802, %v1104
  %1106 = vmatmul.f32.gmra.mxu0 %v1043
  %v1107 = vpop.f32.mrf.mxu0
  %v1108 = vadd.f32 %v802, %v1107
  %1109 = vmatmul.f32.gmra.mxu0 %v1046
  %v1110 = vpop.f32.mrf.mxu0
  %v1111 = vadd.f32 %v802, %v1110
  %1112 = vmatmul.f32.gmra.mxu0 %v1049
  %v1113 = vpop.f32.mrf.mxu0
  %v1114 = vadd.f32 %v802, %v1113
  %1115 = vmatmul.f32.gmra.mxu0 %v1052
  %v1116 = vpop.f32.mrf.mxu0
  %v1117 = vadd.f32 %v802, %v1116
  %1118 = vmatmul.f32.gmra.mxu0 %v1055
  %v1119 = vpop.f32.mrf.mxu0
  %v1120 = vadd.f32 %v802, %v1119
  %1121 = vdwg.mxu0
  %vm1122 = vcmp.gt.f32.partialorder %v1075, 0.0
  %vm1123 = vcmp.gt.f32.partialorder %v1078, 0.0
  %vm1124 = vcmp.gt.f32.partialorder %v1081, 0.0
  %vm1125 = vcmp.gt.f32.partialorder %v1084, 0.0
  %vm1126 = vcmp.gt.f32.partialorder %v1087, 0.0
  %vm1127 = vcmp.gt.f32.partialorder %v1090, 0.0
  %vm1128 = vcmp.gt.f32.partialorder %v1093, 0.0
  %vm1129 = vcmp.gt.f32.partialorder %v1096, 0.0
  %vm1130 = vcmp.gt.f32.partialorder %v1099, 0.0
  %vm1131 = vcmp.gt.f32.partialorder %v1102, 0.0
  %vm1132 = vcmp.gt.f32.partialorder %v1105, 0.0
  %vm1133 = vcmp.gt.f32.partialorder %v1108, 0.0
  %vm1134 = vcmp.gt.f32.partialorder %v1111, 0.0
  %vm1135 = vcmp.gt.f32.partialorder %v1114, 0.0
  %vm1136 = vcmp.gt.f32.partialorder %v1117, 0.0
  %vm1137 = vcmp.gt.f32.partialorder %v1120, 0.0
  %v1138 = vmul.f32 %v1075, 0.01
  %v1139 = vmul.f32 %v1078, 0.01
  %v1140 = vmul.f32 %v1081, 0.01
  %v1141 = vmul.f32 %v1084, 0.01
  %v1142 = vmul.f32 %v1087, 0.01
  %v1143 = vmul.f32 %v1090, 0.01
  %v1144 = vmul.f32 %v1093, 0.01
  %v1145 = vmul.f32 %v1096, 0.01
  %v1146 = vmul.f32 %v1099, 0.01
  %v1147 = vmul.f32 %v1102, 0.01
  %v1148 = vmul.f32 %v1105, 0.01
  %v1149 = vmul.f32 %v1108, 0.01
  %v1150 = vmul.f32 %v1111, 0.01
  %v1151 = vmul.f32 %v1114, 0.01
  %v1152 = vmul.f32 %v1117, 0.01
  %v1153 = vmul.f32 %v1120, 0.01
  %v1154 = vsel %vm1122, %v1075, %v1138
  %v1155 = vsel %vm1123, %v1078, %v1139
  %v1156 = vsel %vm1124, %v1081, %v1140
  %v1157 = vsel %vm1125, %v1084, %v1141
  %v1158 = vsel %vm1126, %v1087, %v1142
  %v1159 = vsel %vm1127, %v1090, %v1143
  %v1160 = vsel %vm1128, %v1093, %v1144
  %v1161 = vsel %vm1129, %v1096, %v1145
  %v1162 = vsel %vm1130, %v1099, %v1146
  %v1163 = vsel %vm1131, %v1102, %v1147
  %v1164 = vsel %vm1132, %v1105, %v1148
  %v1165 = vsel %vm1133, %v1108, %v1149
  %v1166 = vsel %vm1134, %v1111, %v1150
  %v1167 = vsel %vm1135, %v1114, %v1151
  %v1168 = vsel %vm1136, %v1117, %v1152
  %v1169 = vsel %vm1137, %v1120, %v1153
  %1170 = vmatpush.msra.mxu0 %v1169
  %1171 = vmatpush.msra.mxu0 %v1168
  %1172 = vmatpush.msra.mxu0 %v1167
  %1173 = vmatpush.msra.mxu0 %v1166
  %1174 = vmatpush.msra.mxu0 %v1165
  %1175 = vmatpush.msra.mxu0 %v1164
  %1176 = vmatpush.msra.mxu0 %v1163
  %1177 = vmatpush.msra.mxu0 %v1162
  %1178 = vmatpush.msra.mxu0 %v1161
  %1179 = vmatpush.msra.mxu0 %v1160
  %1180 = vmatpush.msra.mxu0 %v1159
  %1181 = vmatpush.msra.mxu0 %v1158
  %1182 = vmatpush.msra.mxu0 %v1157
  %1183 = vmatpush.msra.mxu0 %v1156
  %1184 = vmatpush.msra.mxu0 %v1155
  %1185 = vmatpush.msra.mxu0 %v1154
  %1186 = vmatmul.f32.gmra.mxu0 %v684
  %v1187 = vpop.f32.mrf.mxu0
  %v1188 = vadd.f32 0.0, %v1187
  %1189 = vdwg.mxu0
  %v1190 = vld [vmem:[%s8 + $0x100] sm:$0xff]
  %v1191 = vld [vmem:[%s8 + $0x108] sm:$0xff]
  %v1192 = vld [vmem:[%s8 + $0x110] sm:$0xff]
  %v1193 = vld [vmem:[%s8 + $0x118] sm:$0xff]
  %v1194 = vld [vmem:[%s8 + $0x120] sm:$0xff]
  %v1195 = vld [vmem:[%s8 + $0x128] sm:$0xff]
  %v1196 = vld [vmem:[%s8 + $0x130] sm:$0xff]
  %v1197 = vld [vmem:[%s8 + $0x138] sm:$0xff]
  %v1198 = vld [vmem:[%s8 + $0x140] sm:$0xff]
  %v1199 = vld [vmem:[%s8 + $0x148] sm:$0xff]
  %v1200 = vld [vmem:[%s8 + $0x150] sm:$0xff]
  %v1201 = vld [vmem:[%s8 + $0x158] sm:$0xff]
  %v1202 = vld [vmem:[%s8 + $0x160] sm:$0xff]
  %v1203 = vld [vmem:[%s8 + $0x168] sm:$0xff]
  %v1204 = vld [vmem:[%s8 + $0x170] sm:$0xff]
  %v1205 = vld [vmem:[%s8 + $0x178] sm:$0xff]
  %1206 = vmatpush.msra.mxu0 %v1205
  %1207 = vmatpush.msra.mxu0 %v1204
  %1208 = vmatpush.msra.mxu0 %v1203
  %1209 = vmatpush.msra.mxu0 %v1202
  %1210 = vmatpush.msra.mxu0 %v1201
  %1211 = vmatpush.msra.mxu0 %v1200
  %1212 = vmatpush.msra.mxu0 %v1199
  %1213 = vmatpush.msra.mxu0 %v1198
  %1214 = vmatpush.msra.mxu0 %v1197
  %1215 = vmatpush.msra.mxu0 %v1196
  %1216 = vmatpush.msra.mxu0 %v1195
  %1217 = vmatpush.msra.mxu0 %v1194
  %1218 = vmatpush.msra.mxu0 %v1193
  %1219 = vmatpush.msra.mxu0 %v1192
  %1220 = vmatpush.msra.mxu0 %v1191
  %1221 = vmatpush.msra.mxu0 %v1190
  %1222 = vmatmul.f32.gmra.mxu0 %v1188
  %v1223 = vpop.f32.mrf.mxu0
  %v1224 = vadd.f32 0.0, %v1223
  %1225 = vdwg.mxu0
  %v1226 = vadd.f32 %v990, %v1224
  %v1227 = vperm.slane %v44, 0
  %v1228 = vadd.f32 %v1226, %v1227
  %1229 = vst [vmem:[%s12] sm:$0xff] %v1228
  %v1230 = vld [vmem:[%s9] sm:$0xff]
  %v1231 = vld [vmem:[%s9 + $0x8] sm:$0xff]
  %v1232 = vld [vmem:[%s9 + $0x10] sm:$0xff]
  %v1233 = vld [vmem:[%s9 + $0x18] sm:$0xff]
  %v1234 = vld [vmem:[%s9 + $0x20] sm:$0xff]
  %v1235 = vld [vmem:[%s9 + $0x28] sm:$0xff]
  %v1236 = vld [vmem:[%s9 + $0x30] sm:$0xff]
  %v1237 = vld [vmem:[%s9 + $0x38] sm:$0xff]
  %v1238 = vld [vmem:[%s9 + $0x40] sm:$0xff]
  %v1239 = vld [vmem:[%s9 + $0x48] sm:$0xff]
  %v1240 = vld [vmem:[%s9 + $0x50] sm:$0xff]
  %v1241 = vld [vmem:[%s9 + $0x58] sm:$0xff]
  %v1242 = vld [vmem:[%s9 + $0x60] sm:$0xff]
  %v1243 = vld [vmem:[%s9 + $0x68] sm:$0xff]
  %v1244 = vld [vmem:[%s9 + $0x70] sm:$0xff]
  %v1245 = vld [vmem:[%s9 + $0x78] sm:$0xff]
  %v1246 = vperm.slane %v45, 0
  %1247 = vmatpush.msra.mxu0 %v1245
  %1248 = vmatpush.msra.mxu0 %v1244
  %1249 = vmatpush.msra.mxu0 %v1243
  %1250 = vmatpush.msra.mxu0 %v1242
  %1251 = vmatpush.msra.mxu0 %v1241
  %1252 = vmatpush.msra.mxu0 %v1240
  %1253 = vmatpush.msra.mxu0 %v1239
  %1254 = vmatpush.msra.mxu0 %v1238
  %1255 = vmatpush.msra.mxu0 %v1237
  %1256 = vmatpush.msra.mxu0 %v1236
  %1257 = vmatpush.msra.mxu0 %v1235
  %1258 = vmatpush.msra.mxu0 %v1234
  %1259 = vmatpush.msra.mxu0 %v1233
  %1260 = vmatpush.msra.mxu0 %v1232
  %1261 = vmatpush.msra.mxu0 %v1231
  %1262 = vmatpush.msra.mxu0 %v1230
  %1263 = vmatmul.f32.gmra.mxu0 %v1228
  %v1264 = vpop.f32.mrf.mxu0
  %v1265 = vadd.f32 %v1246, %v1264
  %1266 = vdwg.mxu0
  %1267 = vmax.xlane.f32.xlu0 %v1265
  %v1268 = vpop.xlane.xlu0 %1267
  %v1269 = vsub.f32 %v1265, %v1268
  %v1270 = vmul.f32 %v1269, 1.442695
  %v1271 = vpow.pop %v1270
  %1272 = vadd.xlane.f32.xlu0 %v1271
  %v1273 = vpop.xlane.xlu0 %1272
  %v1274 = vrcp.pop %v1273
  %v1275 = vmul.f32 %v1273, %v1274
  %v1276 = vsub.f32 1.0, %v1275
  %v1277 = vmul.f32 %v1274, %v1276
  %v1278 = vadd.f32 %v1274, %v1277
  %vm1279 = vweird.f32 %v1273
  %vm1280 = vweird.f32 %v1274
  %vm1281 = vmor %vm1279, %vm1280
  %v1282 = vsel %vm1281, %v1274, %v1278
  %v1283 = vand.u32 2147483647, %v1273
  %vm1284 = vcmp.eq.f32.partialorder %v1283, 8.507059e+37
  %v1285 = vand.u32 %v1273, 2147483648
  %v1286 = vor.u32 1.1754944e-38, %v1285
  %v1287 = vsel %vm1284, %v1286, %v1282
  %v1288 = vmul.f32 %v1271, %v1287
  %1289 = vst [vmem:[%s11] sm:$0xff] %v1288
  // Predicated region
  $region46: #{gcn_model_forward.1} parent=0 // pred_check
    _
  $region47: #{gcn_model_forward.1} parent=0 // pred_check_branch
    %1291 = sbr.rel (0) target = $region49
  $region48: #{gcn_model_forward.1} parent=0 // pred_region
    _
  $region49: #{gcn_model_forward.1} parent=0 // pred_fallthru
    _
  // Predicated region
  $region50: #{gcn_model_forward.1} parent=0 // pred_check
    _
  $region51: #{gcn_model_forward.1} parent=0 // pred_check_branch
    %1293 = sbr.rel (0) target = $region53
  $region52: #{gcn_model_forward.1} parent=0 // pred_region
    _
  $region53: #{gcn_model_forward.1} parent=0 // pred_fallthru
    _
  // Predicated region
  $region54: #{gcn_model_forward.1} parent=0 // pred_check
    _
  $region55: #{gcn_model_forward.1} parent=0 // pred_check_branch
    %1295 = sbr.rel (0) target = $region57
  $region56: #{gcn_model_forward.1} parent=0 // pred_region
    _
  $region57: #{gcn_model_forward.1} parent=0 // pred_fallthru
    _
  // Predicated region
  $region58: #{gcn_model_forward.1} parent=0 // pred_check
    _
  $region59: #{gcn_model_forward.1} parent=0 // pred_check_branch
    %1297 = sbr.rel (0) target = $region61
  $region60: #{gcn_model_forward.1} parent=0 // pred_region
    _
  $region61: #{gcn_model_forward.1} parent=0 // pred_fallthru
    _
  // Predicated region
  $region62: #{gcn_model_forward.1} parent=0 // pred_check
    _
  $region63: #{gcn_model_forward.1} parent=0 // pred_check_branch
    %1299 = sbr.rel (0) target = $region65
  $region64: #{gcn_model_forward.1} parent=0 // pred_region
    _
  $region65: #{gcn_model_forward.1} parent=0 // pred_fallthru
    _
  // Predicated region
  $region66: #{gcn_model_forward.1} parent=0 // pred_check
    _
  $region67: #{gcn_model_forward.1} parent=0 // pred_check_branch
    %1301 = sbr.rel (0) target = $region69
  $region68: #{gcn_model_forward.1} parent=0 // pred_region
    _
  $region69: #{gcn_model_forward.1} parent=0 // pred_fallthru
    _

</llo_original>
